<compile_context>
chip_gen: v7x
topology: tpu7x:2x2x1
jax: 0.10.0
libtpu: 0.0.40
codegen_flags: <defaults>
</compile_context>

<pallas_src>
import jax
import jax.numpy as jnp
from jax.experimental import pallas as pl
from jax.experimental.pallas import tpu as pltpu


def _round_up(n: int, m: int) -> int:
    return ((n + m - 1) // m) * m


def _pad_axis(x, target: int, axis: int):
    pad = target - x.shape[axis]
    if pad <= 0:
        return x
    widths = [(0, 0)] * x.ndim
    widths[axis] = (0, pad)
    return jnp.pad(x, widths)


def decoder_kernel(z_ref, w1_ref, b1_ref, w2_ref, b2_ref, w3_ref, b3_ref, out_ref):
    """One batch tile of the fused 3-layer MLP.

    z and weights arrive as bf16 (halved DMA / VMEM); biases as f32 (1, N).
    Dots run on the MXU with bf16 operands and f32 accumulation; bias-add and
    ReLU stay in f32 (v5e VPU has no bf16 path).
    """
    # Layer 1: Linear(latent -> hidden) + ReLU
    h = jnp.dot(z_ref[...], w1_ref[...], preferred_element_type=jnp.float32) + b1_ref[...]
    h = jnp.maximum(h, 0.0)

    # Layer 2: Linear(hidden -> hidden) + ReLU
    h = jnp.dot(h.astype(jnp.bfloat16), w2_ref[...],
                preferred_element_type=jnp.float32) + b2_ref[...]
    h = jnp.maximum(h, 0.0)

    # Layer 3: Linear(hidden -> output), no activation
    o = jnp.dot(h.astype(jnp.bfloat16), w3_ref[...],
                preferred_element_type=jnp.float32) + b3_ref[...]
    out_ref[...] = o.astype(out_ref.dtype)


def _tensorcores_per_chip() -> int:
    """2 TensorCores on v7x, otherwise 1 (v5e/v6e)."""
    try:
        kind = jax.devices()[0].device_kind.lower()
    except Exception:
        return 1
    return 2 if ("v7" in kind or "7x" in kind) else 1


def _choose_batch_tile(B: int, batch_tile, ncores: int) -> int:
    """Pick the batch-tile size (always a multiple of 8, never collapsing the v7x grid)."""
    b8 = _round_up(B, 8)
    if batch_tile is not None:
        tb = _round_up(max(8, min(int(batch_tile), b8)), 8)
    elif ncores <= 1:
        # single TC (v5e/v6e): one big tile for small batches; 512 (multiple of 256,
        # matching the 2x256 MXU M-occupancy) for large batches.
        tb = b8 if B <= 2048 else 512
    else:
        tb = _round_up(pl.cdiv(B, ncores), 8) if B <= 4096 else 512
    if ncores >= 2 and b8 >= 16:
        # keep >= ncores grid steps so every TensorCore gets work on v7x
        tb = min(tb, _round_up(pl.cdiv(b8, ncores), 8))
    return max(8, min(tb, b8))


def decoder_forward(z, params, *, batch_tile=None, out_dtype=jnp.float32):
    """z: [B, latent_dim] -> [B, output_dim]. Lane-pads hidden/output dims, tiles the batch."""
    w1, b1, w2, b2, w3, b3 = params
    B, L = z.shape
    H = w1.shape[1]
    O = w3.shape[1]

    # Lane-align hidden/output dims to 128 (zero padding is exact: padded weight
    # rows/cols and bias entries are zero). The tiny latent dim is left un-padded:
    # block dim == full array extent is legal and keeps the streamed z DMA small.
    Hp = _round_up(H, 128)
    Op = _round_up(O, 128)

    ncores = _tensorcores_per_chip()
    tb = _choose_batch_tile(B, batch_tile, ncores)
    Bp = _round_up(B, tb)

    # z is the streamed input: bf16 cast is folded into the batch pad (one wrapper op).
    z_p = _pad_axis(z.astype(jnp.bfloat16), Bp, 0)
    w1_p = _pad_axis(w1, Hp, 1).astype(jnp.bfloat16)
    w2_p = _pad_axis(_pad_axis(w2, Hp, 0), Hp, 1).astype(jnp.bfloat16)
    w3_p = _pad_axis(_pad_axis(w3, Hp, 0), Op, 1).astype(jnp.bfloat16)
    b1_p = _pad_axis(b1, Hp, 1).astype(jnp.float32)
    b2_p = _pad_axis(b2, Hp, 1).astype(jnp.float32)
    b3_p = _pad_axis(b3, Op, 1).astype(jnp.float32)

    grid = (Bp // tb,)

    flops = 2 * Bp * (L * Hp + Hp * Hp + Hp * Op)
    bytes_accessed = (
        z_p.size * 2 + w1_p.size * 2 + w2_p.size * 2 + w3_p.size * 2
        + b1_p.size * 4 + b2_p.size * 4 + b3_p.size * 4
        + Bp * Op * jnp.dtype(out_dtype).itemsize
    )

    const = lambda i: (0, 0)  # weights / biases: same block every grid step (stay resident)

    def _call(single_buffer_weights: bool):
        # Weights never change block index -> a single pipeline buffer suffices
        # (halves resident-weight VMEM; a v7x-proofing guard as hidden_dim grows).
        wkw = {"pipeline_mode": pl.Buffered(1)} if single_buffer_weights else {}
        return pl.pallas_call(
            decoder_kernel,
            out_shape=jax.ShapeDtypeStruct((Bp, Op), out_dtype),
            grid_spec=pltpu.PrefetchScalarGridSpec(
                num_scalar_prefetch=0,
                grid=grid,
                in_specs=[
                    pl.BlockSpec((tb, L), lambda i: (i, 0)),         # z: streamed per batch tile
                    pl.BlockSpec((L, Hp), const, **wkw),             # w1
                    pl.BlockSpec((1, Hp), const, **wkw),             # b1
                    pl.BlockSpec((Hp, Hp), const, **wkw),            # w2
                    pl.BlockSpec((1, Hp), const, **wkw),             # b2
                    pl.BlockSpec((Hp, Op), const, **wkw),            # w3
                    pl.BlockSpec((1, Op), const, **wkw),             # b3
                ],
                out_specs=pl.BlockSpec((tb, Op), lambda i: (i, 0)),
            ),
            compiler_params=pltpu.CompilerParams(
                dimension_semantics=("parallel",),  # shard batch tiles across TCs on v7x
            ),
            cost_estimate=pl.CostEstimate(
                flops=flops, transcendentals=0, bytes_accessed=bytes_accessed),
        )(z_p, w1_p, b1_p, w2_p, b2_p, w3_p, b3_p)

    try:
        out_padded = _call(True)
    except Exception:
        # Fallback if this jax build rejects Buffered(1): identical numerics,
        # just default double-buffering of the resident weights.
        out_padded = _call(False)

    return out_padded[:B, :O]


def init_decoder_params(key, latent_dim, hidden_dim, output_dim):
    """Deterministic init matching nn.Linear shapes (weights stored [in, out])."""
    k1, k2, k3, k4, k5, k6 = jax.random.split(key, 6)

    def lin(kw, kb, fan_in, fan_out):
        bound = 1.0 / jnp.sqrt(fan_in)
        w = jax.random.uniform(kw, (fan_in, fan_out), jnp.float32, -bound, bound)
        b = jax.random.uniform(kb, (1, fan_out), jnp.float32, -bound, bound)
        return w, b

    w1, b1 = lin(k1, k2, latent_dim, hidden_dim)
    w2, b2 = lin(k3, k4, hidden_dim, hidden_dim)
    w3, b3 = lin(k5, k6, hidden_dim, output_dim)
    return (w1, b1, w2, b2, w3, b3)


def decoder_reference(z, params):
    """Pure-JAX f32 reference of the PyTorch forward for verification."""
    w1, b1, w2, b2, w3, b3 = params
    h = jnp.maximum(z @ w1 + b1, 0.0)
    h = jnp.maximum(h @ w2 + b2, 0.0)
    return h @ w3 + b3


if __name__ == "__main__":
    # Shapes consistent with the module defaults: num_layers=3, hidden_dim=256,
    # output_dim = latent_dim * 2. Small batch; the tile heuristic still exercises
    # one tile on v5e/v6e and two tiles on v7x.
    batch = 64
    latent_dim = 16
    hidden_dim = 256
    output_dim = latent_dim * 2

    key = jax.random.PRNGKey(0)
    kz, kp = jax.random.split(key)
    z = jax.random.normal(kz, (batch, latent_dim), dtype=jnp.float32)
    params = init_decoder_params(kp, latent_dim, hidden_dim, output_dim)

    out = decoder_forward(z, params)
    out = jax.block_until_ready(out)

    ref = decoder_reference(z, params)
    assert out.shape == (batch, output_dim)
    # bf16 MXU operands (f32 accumulate) => loosened tolerance vs the pure-f32 reference.
    assert jnp.allclose(out, ref, atol=5e-2, rtol=5e-2), (
        float(jnp.max(jnp.abs(out - ref))))

    print("KERNEL_OK")
</pallas_src>

<mosaic_0001>
module attributes {stable_mosaic.version = 11 : i64} {
  func.func @decoder_kernel(%arg0: i32, %arg1: memref<64x16xbf16, #tpu.memory_space<vmem>>, %arg2: memref<16x256xbf16, #tpu.memory_space<vmem>>, %arg3: memref<1x256xf32, #tpu.memory_space<vmem>>, %arg4: memref<256x256xbf16, #tpu.memory_space<vmem>>, %arg5: memref<1x256xf32, #tpu.memory_space<vmem>>, %arg6: memref<256x128xbf16, #tpu.memory_space<vmem>>, %arg7: memref<1x128xf32, #tpu.memory_space<vmem>>, %arg8: memref<64x128xf32, #tpu.memory_space<vmem>>) attributes {dimension_semantics = [#tpu.dimension_semantics<parallel>], iteration_bounds = array<i64: 1>, scalar_prefetch = 0 : i64, scratch_operands = 0 : i64, tpu.core_type = #tpu.core_type<tc>, window_params = [{transform_indices = @transform_0, window_bounds = array<i64: 64, 16>}, {pipeline_mode = #tpu.pipeline_mode<synchronous>, transform_indices = @transform_1, window_bounds = array<i64: 16, 256>}, {pipeline_mode = #tpu.pipeline_mode<synchronous>, transform_indices = @transform_2, window_bounds = array<i64: 1, 256>}, {pipeline_mode = #tpu.pipeline_mode<synchronous>, transform_indices = @transform_3, window_bounds = array<i64: 256, 256>}, {pipeline_mode = #tpu.pipeline_mode<synchronous>, transform_indices = @transform_4, window_bounds = array<i64: 1, 256>}, {pipeline_mode = #tpu.pipeline_mode<synchronous>, transform_indices = @transform_5, window_bounds = array<i64: 256, 128>}, {pipeline_mode = #tpu.pipeline_mode<synchronous>, transform_indices = @transform_6, window_bounds = array<i64: 1, 128>}, {transform_indices = @transform_7, window_bounds = array<i64: 64, 128>}]} {
    %c0 = arith.constant 0 : index
    %c0_0 = arith.constant 0 : index
    %0 = vector.load %arg1[%c0, %c0_0] : memref<64x16xbf16, #tpu.memory_space<vmem>>, vector<64x16xbf16>
    %c0_1 = arith.constant 0 : index
    %c0_2 = arith.constant 0 : index
    %1 = vector.load %arg2[%c0_1, %c0_2] : memref<16x256xbf16, #tpu.memory_space<vmem>>, vector<16x256xbf16>
    %cst = arith.constant dense<0.000000e+00> : vector<64x256xf32>
    %2 = tpu.matmul %0, %1, %cst {dimension_numbers = #tpu.dot_dimension_numbers<[1], [0], [0], [1], [0, 0, 1, 1], [], []>} : vector<64x16xbf16>, vector<16x256xbf16>, vector<64x256xf32> -> vector<64x256xf32>
    %c0_3 = arith.constant 0 : index
    %c0_4 = arith.constant 0 : index
    %3 = vector.load %arg3[%c0_3, %c0_4] : memref<1x256xf32, #tpu.memory_space<vmem>>, vector<1x256xf32>
    %4 = vector.broadcast %3 : vector<1x256xf32> to vector<64x256xf32>
    %5 = arith.addf %2, %4 : vector<64x256xf32>
    %cst_5 = arith.constant 0.000000e+00 : f32
    %6 = vector.broadcast %cst_5 : f32 to vector<64x256xf32>
    %7 = arith.maximumf %5, %6 : vector<64x256xf32>
    %8 = arith.truncf %7 : vector<64x256xf32> to vector<64x256xbf16>
    %c0_6 = arith.constant 0 : index
    %c0_7 = arith.constant 0 : index
    %9 = vector.load %arg4[%c0_6, %c0_7] : memref<256x256xbf16, #tpu.memory_space<vmem>>, vector<256x256xbf16>
    %cst_8 = arith.constant dense<0.000000e+00> : vector<64x256xf32>
    %10 = tpu.matmul %8, %9, %cst_8 {dimension_numbers = #tpu.dot_dimension_numbers<[1], [0], [0], [1], [0, 0, 1, 1], [], []>} : vector<64x256xbf16>, vector<256x256xbf16>, vector<64x256xf32> -> vector<64x256xf32>
    %c0_9 = arith.constant 0 : index
    %c0_10 = arith.constant 0 : index
    %11 = vector.load %arg5[%c0_9, %c0_10] : memref<1x256xf32, #tpu.memory_space<vmem>>, vector<1x256xf32>
    %12 = vector.broadcast %11 : vector<1x256xf32> to vector<64x256xf32>
    %13 = arith.addf %10, %12 : vector<64x256xf32>
    %cst_11 = arith.constant 0.000000e+00 : f32
    %14 = vector.broadcast %cst_11 : f32 to vector<64x256xf32>
    %15 = arith.maximumf %13, %14 : vector<64x256xf32>
    %16 = arith.truncf %15 : vector<64x256xf32> to vector<64x256xbf16>
    %c0_12 = arith.constant 0 : index
    %c0_13 = arith.constant 0 : index
    %17 = vector.load %arg6[%c0_12, %c0_13] : memref<256x128xbf16, #tpu.memory_space<vmem>>, vector<256x128xbf16>
    %cst_14 = arith.constant dense<0.000000e+00> : vector<64x128xf32>
    %18 = tpu.matmul %16, %17, %cst_14 {dimension_numbers = #tpu.dot_dimension_numbers<[1], [0], [0], [1], [0, 0, 1, 1], [], []>} : vector<64x256xbf16>, vector<256x128xbf16>, vector<64x128xf32> -> vector<64x128xf32>
    %c0_15 = arith.constant 0 : index
    %c0_16 = arith.constant 0 : index
    %19 = vector.load %arg7[%c0_15, %c0_16] : memref<1x128xf32, #tpu.memory_space<vmem>>, vector<1x128xf32>
    %20 = vector.broadcast %19 : vector<1x128xf32> to vector<64x128xf32>
    %21 = arith.addf %18, %20 : vector<64x128xf32>
    %c0_17 = arith.constant 0 : index
    %c0_18 = arith.constant 0 : index
    %22 = vector.load %arg8[%c0_17, %c0_18] : memref<64x128xf32, #tpu.memory_space<vmem>>, vector<64x128xf32>
    tpu.vector_store %arg8[%c0_17, %c0_18], %21 {strides = array<i32>} : memref<64x128xf32, #tpu.memory_space<vmem>>, vector<64x128xf32>,
    return
  }
  func.func @transform_0(%arg0: i32) -> (i32, i32) {
    %c0_i32 = arith.constant 0 : i32
    %c0_i32_0 = arith.constant 0 : i32
    return %arg0, %c0_i32 : i32, i32
  }
  func.func @transform_1(%arg0: i32) -> (i32, i32) {
    %c0_i32 = arith.constant 0 : i32
    %c0_i32_0 = arith.constant 0 : i32
    %c0_i32_1 = arith.constant 0 : i32
    return %c0_i32, %c0_i32_0 : i32, i32
  }
  func.func @transform_2(%arg0: i32) -> (i32, i32) {
    %c0_i32 = arith.constant 0 : i32
    %c0_i32_0 = arith.constant 0 : i32
    %c0_i32_1 = arith.constant 0 : i32
    return %c0_i32, %c0_i32_0 : i32, i32
  }
  func.func @transform_3(%arg0: i32) -> (i32, i32) {
    %c0_i32 = arith.constant 0 : i32
    %c0_i32_0 = arith.constant 0 : i32
    %c0_i32_1 = arith.constant 0 : i32
    return %c0_i32, %c0_i32_0 : i32, i32
  }
  func.func @transform_4(%arg0: i32) -> (i32, i32) {
    %c0_i32 = arith.constant 0 : i32
    %c0_i32_0 = arith.constant 0 : i32
    %c0_i32_1 = arith.constant 0 : i32
    return %c0_i32, %c0_i32_0 : i32, i32
  }
  func.func @transform_5(%arg0: i32) -> (i32, i32) {
    %c0_i32 = arith.constant 0 : i32
    %c0_i32_0 = arith.constant 0 : i32
    %c0_i32_1 = arith.constant 0 : i32
    return %c0_i32, %c0_i32_0 : i32, i32
  }
  func.func @transform_6(%arg0: i32) -> (i32, i32) {
    %c0_i32 = arith.constant 0 : i32
    %c0_i32_0 = arith.constant 0 : i32
    %c0_i32_1 = arith.constant 0 : i32
    return %c0_i32, %c0_i32_0 : i32, i32
  }
  func.func @transform_7(%arg0: i32) -> (i32, i32) {
    %c0_i32 = arith.constant 0 : i32
    %c0_i32_0 = arith.constant 0 : i32
    return %arg0, %c0_i32 : i32, i32
  }
}

module attributes {stable_mosaic.version = 11 : i64} {
  func.func @decoder_kernel(%arg0: i32, %arg1: memref<64x16xbf16, #tpu.memory_space<vmem>>, %arg2: memref<16x256xbf16, #tpu.memory_space<vmem>>, %arg3: memref<1x256xf32, #tpu.memory_space<vmem>>, %arg4: memref<256x256xbf16, #tpu.memory_space<vmem>>, %arg5: memref<1x256xf32, #tpu.memory_space<vmem>>, %arg6: memref<256x128xbf16, #tpu.memory_space<vmem>>, %arg7: memref<1x128xf32, #tpu.memory_space<vmem>>, %arg8: memref<64x128xf32, #tpu.memory_space<vmem>>) attributes {dimension_semantics = [#tpu.dimension_semantics<parallel>], iteration_bounds = array<i64: 1>, scalar_prefetch = 0 : i64, scratch_operands = 0 : i64, tpu.core_type = #tpu.core_type<tc>, window_params = [{transform_indices = @transform_0, window_bounds = array<i64: 64, 16>}, {pipeline_mode = #tpu.pipeline_mode<synchronous>, transform_indices = @transform_1, window_bounds = array<i64: 16, 256>}, {pipeline_mode = #tpu.pipeline_mode<synchronous>, transform_indices = @transform_2, window_bounds = array<i64: 1, 256>}, {pipeline_mode = #tpu.pipeline_mode<synchronous>, transform_indices = @transform_3, window_bounds = array<i64: 256, 256>}, {pipeline_mode = #tpu.pipeline_mode<synchronous>, transform_indices = @transform_4, window_bounds = array<i64: 1, 256>}, {pipeline_mode = #tpu.pipeline_mode<synchronous>, transform_indices = @transform_5, window_bounds = array<i64: 256, 128>}, {pipeline_mode = #tpu.pipeline_mode<synchronous>, transform_indices = @transform_6, window_bounds = array<i64: 1, 128>}, {transform_indices = @transform_7, window_bounds = array<i64: 64, 128>}]} {
    %c0 = arith.constant 0 : index
    %c0_0 = arith.constant 0 : index
    %0 = vector.load %arg1[%c0, %c0_0] : memref<64x16xbf16, #tpu.memory_space<vmem>>, vector<64x16xbf16>
    %c0_1 = arith.constant 0 : index
    %c0_2 = arith.constant 0 : index
    %1 = vector.load %arg2[%c0_1, %c0_2] : memref<16x256xbf16, #tpu.memory_space<vmem>>, vector<16x256xbf16>
    %cst = arith.constant dense<0.000000e+00> : vector<64x256xf32>
    %2 = tpu.matmul %0, %1, %cst {dimension_numbers = #tpu.dot_dimension_numbers<[1], [0], [0], [1], [0, 0, 1, 1], [], []>} : vector<64x16xbf16>, vector<16x256xbf16>, vector<64x256xf32> -> vector<64x256xf32>
    %c0_3 = arith.constant 0 : index
    %c0_4 = arith.constant 0 : index
    %3 = vector.load %arg3[%c0_3, %c0_4] : memref<1x256xf32, #tpu.memory_space<vmem>>, vector<1x256xf32>
    %4 = vector.broadcast %3 : vector<1x256xf32> to vector<64x256xf32>
    %5 = arith.addf %2, %4 : vector<64x256xf32>
    %cst_5 = arith.constant 0.000000e+00 : f32
    %6 = vector.broadcast %cst_5 : f32 to vector<64x256xf32>
    %7 = arith.maximumf %5, %6 : vector<64x256xf32>
    %8 = arith.truncf %7 : vector<64x256xf32> to vector<64x256xbf16>
    %c0_6 = arith.constant 0 : index
    %c0_7 = arith.constant 0 : index
    %9 = vector.load %arg4[%c0_6, %c0_7] : memref<256x256xbf16, #tpu.memory_space<vmem>>, vector<256x256xbf16>
    %cst_8 = arith.constant dense<0.000000e+00> : vector<64x256xf32>
    %10 = tpu.matmul %8, %9, %cst_8 {dimension_numbers = #tpu.dot_dimension_numbers<[1], [0], [0], [1], [0, 0, 1, 1], [], []>} : vector<64x256xbf16>, vector<256x256xbf16>, vector<64x256xf32> -> vector<64x256xf32>
    %c0_9 = arith.constant 0 : index
    %c0_10 = arith.constant 0 : index
    %11 = vector.load %arg5[%c0_9, %c0_10] : memref<1x256xf32, #tpu.memory_space<vmem>>, vector<1x256xf32>
    %12 = vector.broadcast %11 : vector<1x256xf32> to vector<64x256xf32>
    %13 = arith.addf %10, %12 : vector<64x256xf32>
    %cst_11 = arith.constant 0.000000e+00 : f32
    %14 = vector.broadcast %cst_11 : f32 to vector<64x256xf32>
    %15 = arith.maximumf %13, %14 : vector<64x256xf32>
    %16 = arith.truncf %15 : vector<64x256xf32> to vector<64x256xbf16>
    %c0_12 = arith.constant 0 : index
    %c0_13 = arith.constant 0 : index
    %17 = vector.load %arg6[%c0_12, %c0_13] : memref<256x128xbf16, #tpu.memory_space<vmem>>, vector<256x128xbf16>
    %cst_14 = arith.constant dense<0.000000e+00> : vector<64x128xf32>
    %18 = tpu.matmul %16, %17, %cst_14 {dimension_numbers = #tpu.dot_dimension_numbers<[1], [0], [0], [1], [0, 0, 1, 1], [], []>} : vector<64x256xbf16>, vector<256x128xbf16>, vector<64x128xf32> -> vector<64x128xf32>
    %c0_15 = arith.constant 0 : index
    %c0_16 = arith.constant 0 : index
    %19 = vector.load %arg7[%c0_15, %c0_16] : memref<1x128xf32, #tpu.memory_space<vmem>>, vector<1x128xf32>
    %20 = vector.broadcast %19 : vector<1x128xf32> to vector<64x128xf32>
    %21 = arith.addf %18, %20 : vector<64x128xf32>
    %c0_17 = arith.constant 0 : index
    %c0_18 = arith.constant 0 : index
    %22 = vector.load %arg8[%c0_17, %c0_18] : memref<64x128xf32, #tpu.memory_space<vmem>>, vector<64x128xf32>
    tpu.vector_store %arg8[%c0_17, %c0_18], %21 {strides = array<i32>} : memref<64x128xf32, #tpu.memory_space<vmem>>, vector<64x128xf32>,
    return
  }
  func.func @transform_0(%arg0: i32) -> (i32, i32) {
    %c0_i32 = arith.constant 0 : i32
    %c0_i32_0 = arith.constant 0 : i32
    return %arg0, %c0_i32 : i32, i32
  }
  func.func @transform_1(%arg0: i32) -> (i32, i32) {
    %c0_i32 = arith.constant 0 : i32
    %c0_i32_0 = arith.constant 0 : i32
    %c0_i32_1 = arith.constant 0 : i32
    return %c0_i32, %c0_i32_0 : i32, i32
  }
  func.func @transform_2(%arg0: i32) -> (i32, i32) {
    %c0_i32 = arith.constant 0 : i32
    %c0_i32_0 = arith.constant 0 : i32
    %c0_i32_1 = arith.constant 0 : i32
    return %c0_i32, %c0_i32_0 : i32, i32
  }
  func.func @transform_3(%arg0: i32) -> (i32, i32) {
    %c0_i32 = arith.constant 0 : i32
    %c0_i32_0 = arith.constant 0 : i32
    %c0_i32_1 = arith.constant 0 : i32
    return %c0_i32, %c0_i32_0 : i32, i32
  }
  func.func @transform_4(%arg0: i32) -> (i32, i32) {
    %c0_i32 = arith.constant 0 : i32
    %c0_i32_0 = arith.constant 0 : i32
    %c0_i32_1 = arith.constant 0 : i32
    return %c0_i32, %c0_i32_0 : i32, i32
  }
  func.func @transform_5(%arg0: i32) -> (i32, i32) {
    %c0_i32 = arith.constant 0 : i32
    %c0_i32_0 = arith.constant 0 : i32
    %c0_i32_1 = arith.constant 0 : i32
    return %c0_i32, %c0_i32_0 : i32, i32
  }
  func.func @transform_6(%arg0: i32) -> (i32, i32) {
    %c0_i32 = arith.constant 0 : i32
    %c0_i32_0 = arith.constant 0 : i32
    %c0_i32_1 = arith.constant 0 : i32
    return %c0_i32, %c0_i32_0 : i32, i32
  }
  func.func @transform_7(%arg0: i32) -> (i32, i32) {
    %c0_i32 = arith.constant 0 : i32
    %c0_i32_0 = arith.constant 0 : i32
    return %arg0, %c0_i32 : i32, i32
  }
}

</mosaic_0001>

<llo_original>
// kernel: tpu_custom_call.1
$region0: #{tpu_custom_call.1}
  #allocation0 [shape = 'u32[]', space=smem, size = 0x4, offset = 0x4, fixed_abs, tag = 'smem constant byte address 0x4 - core index']
  #allocation1 [shape = 'u32[144,128]{1,0:T(1,128)}', space=vmem, size = 0x12000, scoped, tag = 'internal scratch']
  %s0 = inlined_call_operand.vmem [shape: bf16[64,16], index: 0, kind: input, shape index: {}]
  %s1 = inlined_call_operand.vmem [shape: bf16[16,256], index: 1, kind: input, shape index: {}]
  %s2 = inlined_call_operand.vmem [shape: f32[1,256], index: 2, kind: input, shape index: {}]
  %s3 = inlined_call_operand.hbm [shape: bf16[256,256], index: 3, kind: input, shape index: {}]
  %s4 = inlined_call_operand.vmem [shape: f32[1,256], index: 4, kind: input, shape index: {}]
  %s5 = inlined_call_operand.hbm [shape: bf16[256,128], index: 5, kind: input, shape index: {}]
  %s6 = inlined_call_operand.vmem [shape: f32[1,128], index: 6, kind: input, shape index: {}]
  %s7 = inlined_call_operand.hbm [shape: f32[64,128], index: 7, kind: output, shape index: {}]
  %s8 = sld [smem:[#allocation0]]
  $region46: #{tpu_custom_call.1} parent=0
    _
  %s10 = ssub.s32 1, %s8
  %s11 = scalar_select 0, %s10, %s8
  $region1: #{tpu_custom_call.1} parent=0
    #allocation2 [shape = 'u8[131072]{0}', space=vmem, size = 0x20000, scoped, tag = 'input window, operand 3, single buffered']
    #allocation3 [shape = 's32[1]{0}', space=sflag, size = 0x4, scoped, tag = 'scoped memory for tpu_custom_call.1']
    #allocation4 [shape = 's32[1]{0}', space=sflag, size = 0x4, scoped, tag = 'scoped memory for tpu_custom_call.1']
    #allocation5 [shape = 'u8[65536]{0}', space=vmem, size = 0x10000, scoped, tag = 'input window, operand 5, single buffered']
    #allocation6 [shape = 's32[1]{0}', space=sflag, size = 0x4, scoped, tag = 'scoped memory for tpu_custom_call.1']
    #allocation7 [shape = 'u8[32768]{0}', space=vmem, size = 0x8000, scoped, tag = 'output window, operand 0, single buffered']
    %12 = vsyncpa [#allocation3], 0
    %13 = vsyncpa [#allocation6], 0
    %14 = vsyncpa [#allocation4], 0
    // Predicated region
    $region2: #{tpu_custom_call.1} parent=1 // pred_check
      _
    $region3: #{tpu_custom_call.1} parent=1 // pred_check_branch
      %16 = sbr.rel (0) target = $region5
    $region4: #{tpu_custom_call.1} parent=1 // pred_region
      _
    $region5: #{tpu_custom_call.1} parent=1 // pred_fallthru
      _
    // Predicated region
    $region6: #{tpu_custom_call.1} parent=1 // pred_check
      _
    $region7: #{tpu_custom_call.1} parent=1 // pred_check_branch
      %18 = sbr.rel (0) target = $region9
    $region8: #{tpu_custom_call.1} parent=1 // pred_region
      _
    $region9: #{tpu_custom_call.1} parent=1 // pred_fallthru
      _
    // Predicated region
    $region10: #{tpu_custom_call.1} parent=1 // pred_check
      _
    $region11: #{tpu_custom_call.1} parent=1 // pred_check_branch
      %20 = sbr.rel (0) target = $region13
    $region12: #{tpu_custom_call.1} parent=1 // pred_region
      _
    $region13: #{tpu_custom_call.1} parent=1 // pred_fallthru
      _
    // Predicated region
    $region14: #{tpu_custom_call.1} parent=1 // pred_check
      _
    $region15: #{tpu_custom_call.1} parent=1 // pred_check_branch
      %22 = sbr.rel (0) target = $region17
    $region16: #{tpu_custom_call.1} parent=1 // pred_region
      %s24 = ssub.s32 4096, 4096
      %25 = vsyncadd [#allocation3], %s24
      %s26 = sshll.u32 [#allocation2], 4
      %s27 = int_to_ptr.vmem [resolvable:$true] %s26
      %32 = dma.hbm_to_vmem [thread:$0]  %s3, 4096, %s27, [#allocation3], 128, 128, 8
    $region17: #{tpu_custom_call.1} parent=1 // pred_fallthru
      _
    // Predicated region
    $region18: #{tpu_custom_call.1} parent=1 // pred_check
      _
    $region19: #{tpu_custom_call.1} parent=1 // pred_check_branch
      %34 = sbr.rel (0) target = $region21
    $region20: #{tpu_custom_call.1} parent=1 // pred_region
      _
    $region21: #{tpu_custom_call.1} parent=1 // pred_fallthru
      _
    // Predicated region
    $region22: #{tpu_custom_call.1} parent=1 // pred_check
      _
    $region23: #{tpu_custom_call.1} parent=1 // pred_check_branch
      %36 = sbr.rel (0) target = $region25
    $region24: #{tpu_custom_call.1} parent=1 // pred_region
      %s38 = ssub.s32 2048, 2048
      %39 = vsyncadd [#allocation6], %s38
      %s40 = sshll.u32 [#allocation5], 4
      %s41 = int_to_ptr.vmem [resolvable:$true] %s40
      %46 = dma.hbm_to_vmem [thread:$0]  %s5, 2048, %s41, [#allocation6], 64, 64, 4
    $region25: #{tpu_custom_call.1} parent=1 // pred_fallthru
      _
    // Predicated region
    $region26: #{tpu_custom_call.1} parent=1 // pred_check
      _
    $region27: #{tpu_custom_call.1} parent=1 // pred_check_branch
      %48 = sbr.rel (0) target = $region29
    $region28: #{tpu_custom_call.1} parent=1 // pred_region
      _
    $region29: #{tpu_custom_call.1} parent=1 // pred_fallthru
      _
    // Predicated region
    $region30: #{tpu_custom_call.1} parent=1 // pred_check
      _
    $region31: #{tpu_custom_call.1} parent=1 // pred_check_branch
      %50 = sbr.rel (0) target = $region33
    $region32: #{tpu_custom_call.1} parent=1 // pred_region
      %51 = dma.done [#allocation3], 4096
    $region33: #{tpu_custom_call.1} parent=1 // pred_fallthru
      _
    // Predicated region
    $region34: #{tpu_custom_call.1} parent=1 // pred_check
      _
    $region35: #{tpu_custom_call.1} parent=1 // pred_check_branch
      %53 = sbr.rel (0) target = $region37
    $region36: #{tpu_custom_call.1} parent=1 // pred_region
      %54 = dma.done [#allocation6], 2048
    $region37: #{tpu_custom_call.1} parent=1 // pred_fallthru
      _
    %v56 = vld [vmem:[%s0] sm:$0xf]
    %v57 = vld [vmem:[%s0 + $0x4] sm:$0xf]
    %v58 = vld [vmem:[%s0 + $0x8] sm:$0xf]
    %v59 = vld [vmem:[%s0 + $0xc] sm:$0xf]
    %v60 = vld [vmem:[%s0 + $0x10] sm:$0xf]
    %v61 = vld [vmem:[%s0 + $0x14] sm:$0xf]
    %v62 = vld [vmem:[%s0 + $0x18] sm:$0xf]
    %v63 = vld [vmem:[%s0 + $0x1c] sm:$0xf]
    %v64 = vld [vmem:[%s1] sm:$0xff]
    %v65 = vld [vmem:[%s1 + $0x8] sm:$0xff]
    %v66 = vld [vmem:[%s2] sm:$0x3]
    %v68 = vlaneseq
    %v69 = vshrl.u32 %v68, 7
    %v70 = vsub.s32 0, %v69
    %v71 = vrot.slane %v66, %v70
    %v72 = vlaneseq
    %v73 = vshrl.u32 %v72, 7
    %v74 = vsub.s32 1, %v73
    %v75 = vrot.slane %v66, %v74
    %v86 = vunpack.c.l.b16 %v56
    %v87 = vunpack.c.l.b16 %v57
    %v88 = vunpack.c.l.b16 %v58
    %v89 = vunpack.c.l.b16 %v59
    %v90 = vunpack.c.l.b16 %v60
    %v91 = vunpack.c.l.b16 %v61
    %v92 = vunpack.c.l.b16 %v62
    %v93 = vunpack.c.l.b16 %v63
    %v94 = vpack.c.b16 %v87, %v86
    %v95 = vpack.c.b16 %v89, %v88
    %v96 = vpack.c.b16 %v91, %v90
    %v97 = vpack.c.b16 %v93, %v92
    %v100 = vunpack.c.l.b16 %v64
    %v101 = vunpack.c.h.b16 %v64
    %v102 = vunpack.c.l.b16 %v65
    %v103 = vunpack.c.h.b16 %v65
    %v104 = vpack.c.b16 %v102, %v100
    %v105 = vpack.c.b16 %v103, %v101
    %vm108 = vcmask 130048
    %v110 = vsel %vm108, %v94, 0
    %v113 = vsel %vm108, %v95, 0
    %v116 = vsel %vm108, %v96, 0
    %v119 = vsel %vm108, %v97, 0
    %121 = vmatprep.subr.bf16.mxu0 %v105
    %122 = vmatpush1.bf16.msra.mxu0 %v104
    %123 = vmatprep.subr.bf16.mxu0 0
    %124 = vmatpush1.bf16.msra.mxu0 0
    %125 = vmatprep.subr.bf16.mxu0 0
    %126 = vmatpush1.bf16.msra.mxu0 0
    %127 = vmatprep.subr.bf16.mxu0 0
    %128 = vmatpush1.bf16.msra.mxu0 0
    %129 = vmatprep.subr.bf16.mxu0 0
    %130 = vmatpush1.bf16.msra.mxu0 0
    %131 = vmatprep.subr.bf16.mxu0 0
    %132 = vmatpush1.bf16.msra.mxu0 0
    %133 = vmatprep.subr.bf16.mxu0 0
    %134 = vmatpush1.bf16.msra.mxu0 0
    %135 = vmatprep.subr.bf16.mxu0 0
    %136 = vmatpush1.bf16.msra.mxu0 0
    %137 = vmatprep.subr.bf16.mxu0 0
    %138 = vmatpush1.bf16.msra.mxu0 0
    %139 = vmatprep.subr.bf16.mxu0 0
    %140 = vmatpush1.bf16.msra.mxu0 0
    %141 = vmatprep.subr.bf16.mxu0 0
    %142 = vmatpush1.bf16.msra.mxu0 0
    %143 = vmatprep.subr.bf16.mxu0 0
    %144 = vmatpush1.bf16.msra.mxu0 0
    %145 = vmatprep.subr.bf16.mxu0 0
    %146 = vmatpush1.bf16.msra.mxu0 0
    %147 = vmatprep.subr.bf16.mxu0 0
    %148 = vmatpush1.bf16.msra.mxu0 0
    %149 = vmatprep.subr.bf16.mxu0 0
    %150 = vmatpush1.bf16.msra.mxu0 0
    %151 = vmatprep.subr.bf16.mxu0 0
    %152 = vmatpush1.bf16.msra.mxu0 0
    %153 = vmatprep.mubr.bf16.mxu0 0
    %154 = vmatmul.mubr.bf16.gmra.mrb[0].mxu0 %v110
    %v155 = vpop.f32.mrb[0].mxu0
    %v156 = vadd.f32 %v71, %v155
    %v157 = vpop.f32.mrb[0].mxu0
    %v158 = vadd.f32 %v75, %v157
    %v159 = vpop.f32.mrb[0].mxu0
    %v160 = vadd.f32 %v71, %v159
    %v161 = vpop.f32.mrb[0].mxu0
    %v162 = vadd.f32 %v75, %v161
    %163 = vmatprep.mubr.bf16.mxu0 0
    %164 = vmatmul.mubr.bf16.gmra.mrb[0].mxu0 %v113
    %v165 = vpop.f32.mrb[0].mxu0
    %v166 = vadd.f32 %v71, %v165
    %v167 = vpop.f32.mrb[0].mxu0
    %v168 = vadd.f32 %v75, %v167
    %v169 = vpop.f32.mrb[0].mxu0
    %v170 = vadd.f32 %v71, %v169
    %v171 = vpop.f32.mrb[0].mxu0
    %v172 = vadd.f32 %v75, %v171
    %173 = vmatprep.mubr.bf16.mxu0 0
    %174 = vmatmul.mubr.bf16.gmra.mrb[0].mxu0 %v116
    %v175 = vpop.f32.mrb[0].mxu0
    %v176 = vadd.f32 %v71, %v175
    %v177 = vpop.f32.mrb[0].mxu0
    %v178 = vadd.f32 %v75, %v177
    %v179 = vpop.f32.mrb[0].mxu0
    %v180 = vadd.f32 %v71, %v179
    %v181 = vpop.f32.mrb[0].mxu0
    %v182 = vadd.f32 %v75, %v181
    %183 = vmatprep.mubr.bf16.mxu0 0
    %184 = vmatmul.mubr.bf16.gmra.mrb[0].mxu0 %v119
    %v185 = vpop.f32.mrb[0].mxu0
    %v186 = vadd.f32 %v71, %v185
    %v187 = vpop.f32.mrb[0].mxu0
    %v188 = vadd.f32 %v75, %v187
    %v189 = vpop.f32.mrb[0].mxu0
    %v190 = vadd.f32 %v71, %v189
    %v191 = vpop.f32.mrb[0].mxu0
    %v192 = vadd.f32 %v75, %v191
    %193 = vdwg.mxu0
    %v194 = vmax.f32 %v156, 0.0
    %v195 = vmax.f32 %v158, 0.0
    %v196 = vmax.f32 %v160, 0.0
    %v197 = vmax.f32 %v162, 0.0
    %v198 = vmax.f32 %v166, 0.0
    %v199 = vmax.f32 %v168, 0.0
    %v200 = vmax.f32 %v170, 0.0
    %v201 = vmax.f32 %v172, 0.0
    %v202 = vmax.f32 %v176, 0.0
    %v203 = vmax.f32 %v178, 0.0
    %v204 = vmax.f32 %v180, 0.0
    %v205 = vmax.f32 %v182, 0.0
    %v206 = vmax.f32 %v186, 0.0
    %v207 = vmax.f32 %v188, 0.0
    %v208 = vmax.f32 %v190, 0.0
    %v209 = vmax.f32 %v192, 0.0
    %v210 = vpack.c.bf16 %v196, %v194
    %v211 = vpack.c.bf16 %v197, %v195
    %v212 = vpack.c.bf16 %v200, %v198
    %v213 = vpack.c.bf16 %v201, %v199
    %v214 = vpack.c.bf16 %v204, %v202
    %v215 = vpack.c.bf16 %v205, %v203
    %v216 = vpack.c.bf16 %v208, %v206
    %v217 = vpack.c.bf16 %v209, %v207
    %v218 = vld [vmem:[#allocation2] sm:$0xff]
    %v219 = vld [vmem:[#allocation2 + $0x8] sm:$0xff]
    %v220 = vld [vmem:[#allocation2 + $0x10] sm:$0xff]
    %v221 = vld [vmem:[#allocation2 + $0x18] sm:$0xff]
    %v222 = vld [vmem:[#allocation2 + $0x20] sm:$0xff]
    %v223 = vld [vmem:[#allocation2 + $0x28] sm:$0xff]
    %v224 = vld [vmem:[#allocation2 + $0x30] sm:$0xff]
    %v225 = vld [vmem:[#allocation2 + $0x38] sm:$0xff]
    %v226 = vld [vmem:[#allocation2 + $0x40] sm:$0xff]
    %v227 = vld [vmem:[#allocation2 + $0x48] sm:$0xff]
    %v228 = vld [vmem:[#allocation2 + $0x50] sm:$0xff]
    %v229 = vld [vmem:[#allocation2 + $0x58] sm:$0xff]
    %v230 = vld [vmem:[#allocation2 + $0x60] sm:$0xff]
    %v231 = vld [vmem:[#allocation2 + $0x68] sm:$0xff]
    %v232 = vld [vmem:[#allocation2 + $0x70] sm:$0xff]
    %v233 = vld [vmem:[#allocation2 + $0x78] sm:$0xff]
    %v234 = vld [vmem:[#allocation2 + $0x80] sm:$0xff]
    %v235 = vld [vmem:[#allocation2 + $0x88] sm:$0xff]
    %v236 = vld [vmem:[#allocation2 + $0x90] sm:$0xff]
    %v237 = vld [vmem:[#allocation2 + $0x98] sm:$0xff]
    %v238 = vld [vmem:[#allocation2 + $0xa0] sm:$0xff]
    %v239 = vld [vmem:[#allocation2 + $0xa8] sm:$0xff]
    %v240 = vld [vmem:[#allocation2 + $0xb0] sm:$0xff]
    %v241 = vld [vmem:[#allocation2 + $0xb8] sm:$0xff]
    %v242 = vld [vmem:[#allocation2 + $0xc0] sm:$0xff]
    %v243 = vld [vmem:[#allocation2 + $0xc8] sm:$0xff]
    %v244 = vld [vmem:[#allocation2 + $0xd0] sm:$0xff]
    %v245 = vld [vmem:[#allocation2 + $0xd8] sm:$0xff]
    %v246 = vld [vmem:[#allocation2 + $0xe0] sm:$0xff]
    %v247 = vld [vmem:[#allocation2 + $0xe8] sm:$0xff]
    %v248 = vld [vmem:[#allocation2 + $0xf0] sm:$0xff]
    %v249 = vld [vmem:[#allocation2 + $0xf8] sm:$0xff]
    %v250 = vld [vmem:[%s4] sm:$0x3]
    %v252 = vlaneseq
    %v253 = vshrl.u32 %v252, 7
    %v254 = vsub.s32 0, %v253
    %v255 = vrot.slane %v250, %v254
    %v256 = vlaneseq
    %v257 = vshrl.u32 %v256, 7
    %v258 = vsub.s32 1, %v257
    %v259 = vrot.slane %v250, %v258
    %v294 = vunpack.c.l.b16 %v218
    %v295 = vunpack.c.h.b16 %v218
    %v296 = vunpack.c.l.b16 %v219
    %v297 = vunpack.c.h.b16 %v219
    %v298 = vunpack.c.l.b16 %v220
    %v299 = vunpack.c.h.b16 %v220
    %v300 = vunpack.c.l.b16 %v221
    %v301 = vunpack.c.h.b16 %v221
    %v302 = vunpack.c.l.b16 %v222
    %v303 = vunpack.c.h.b16 %v222
    %v304 = vunpack.c.l.b16 %v223
    %v305 = vunpack.c.h.b16 %v223
    %v306 = vunpack.c.l.b16 %v224
    %v307 = vunpack.c.h.b16 %v224
    %v308 = vunpack.c.l.b16 %v225
    %v309 = vunpack.c.h.b16 %v225
    %v310 = vunpack.c.l.b16 %v226
    %v311 = vunpack.c.h.b16 %v226
    %v312 = vunpack.c.l.b16 %v227
    %v313 = vunpack.c.h.b16 %v227
    %v314 = vunpack.c.l.b16 %v228
    %v315 = vunpack.c.h.b16 %v228
    %v316 = vunpack.c.l.b16 %v229
    %v317 = vunpack.c.h.b16 %v229
    %v318 = vunpack.c.l.b16 %v230
    %v319 = vunpack.c.h.b16 %v230
    %v320 = vunpack.c.l.b16 %v231
    %v321 = vunpack.c.h.b16 %v231
    %v322 = vunpack.c.l.b16 %v232
    %v323 = vunpack.c.h.b16 %v232
    %v324 = vunpack.c.l.b16 %v233
    %v325 = vunpack.c.h.b16 %v233
    %v326 = vunpack.c.l.b16 %v234
    %v327 = vunpack.c.h.b16 %v234
    %v328 = vunpack.c.l.b16 %v235
    %v329 = vunpack.c.h.b16 %v235
    %v330 = vunpack.c.l.b16 %v236
    %v331 = vunpack.c.h.b16 %v236
    %v332 = vunpack.c.l.b16 %v237
    %v333 = vunpack.c.h.b16 %v237
    %v334 = vunpack.c.l.b16 %v238
    %v335 = vunpack.c.h.b16 %v238
    %v336 = vunpack.c.l.b16 %v239
    %v337 = vunpack.c.h.b16 %v239
    %v338 = vunpack.c.l.b16 %v240
    %v339 = vunpack.c.h.b16 %v240
    %v340 = vunpack.c.l.b16 %v241
    %v341 = vunpack.c.h.b16 %v241
    %v342 = vunpack.c.l.b16 %v242
    %v343 = vunpack.c.h.b16 %v242
    %v344 = vunpack.c.l.b16 %v243
    %v345 = vunpack.c.h.b16 %v243
    %v346 = vunpack.c.l.b16 %v244
    %v347 = vunpack.c.h.b16 %v244
    %v348 = vunpack.c.l.b16 %v245
    %v349 = vunpack.c.h.b16 %v245
    %v350 = vunpack.c.l.b16 %v246
    %v351 = vunpack.c.h.b16 %v246
    %v352 = vunpack.c.l.b16 %v247
    %v353 = vunpack.c.h.b16 %v247
    %v354 = vunpack.c.l.b16 %v248
    %v355 = vunpack.c.h.b16 %v248
    %v356 = vunpack.c.l.b16 %v249
    %v357 = vunpack.c.h.b16 %v249
    %v358 = vpack.c.b16 %v296, %v294
    %v359 = vpack.c.b16 %v297, %v295
    %v360 = vpack.c.b16 %v300, %v298
    %v361 = vpack.c.b16 %v301, %v299
    %v362 = vpack.c.b16 %v304, %v302
    %v363 = vpack.c.b16 %v305, %v303
    %v364 = vpack.c.b16 %v308, %v306
    %v365 = vpack.c.b16 %v309, %v307
    %v366 = vpack.c.b16 %v312, %v310
    %v367 = vpack.c.b16 %v313, %v311
    %v368 = vpack.c.b16 %v316, %v314
    %v369 = vpack.c.b16 %v317, %v315
    %v370 = vpack.c.b16 %v320, %v318
    %v371 = vpack.c.b16 %v321, %v319
    %v372 = vpack.c.b16 %v324, %v322
    %v373 = vpack.c.b16 %v325, %v323
    %v374 = vpack.c.b16 %v328, %v326
    %v375 = vpack.c.b16 %v329, %v327
    %v376 = vpack.c.b16 %v332, %v330
    %v377 = vpack.c.b16 %v333, %v331
    %v378 = vpack.c.b16 %v336, %v334
    %v379 = vpack.c.b16 %v337, %v335
    %v380 = vpack.c.b16 %v340, %v338
    %v381 = vpack.c.b16 %v341, %v339
    %v382 = vpack.c.b16 %v344, %v342
    %v383 = vpack.c.b16 %v345, %v343
    %v384 = vpack.c.b16 %v348, %v346
    %v385 = vpack.c.b16 %v349, %v347
    %v386 = vpack.c.b16 %v352, %v350
    %v387 = vpack.c.b16 %v353, %v351
    %v388 = vpack.c.b16 %v356, %v354
    %v389 = vpack.c.b16 %v357, %v355
    %422 = vmatprep.subr.bf16.mxu0 %v359
    %423 = vmatpush1.bf16.msra.mxu0 %v358
    %424 = vmatprep.subr.bf16.mxu0 %v361
    %425 = vmatpush1.bf16.msra.mxu0 %v360
    %426 = vmatprep.subr.bf16.mxu0 %v363
    %427 = vmatpush1.bf16.msra.mxu0 %v362
    %428 = vmatprep.subr.bf16.mxu0 %v365
    %429 = vmatpush1.bf16.msra.mxu0 %v364
    %430 = vmatprep.subr.bf16.mxu0 %v367
    %431 = vmatpush1.bf16.msra.mxu0 %v366
    %432 = vmatprep.subr.bf16.mxu0 %v369
    %433 = vmatpush1.bf16.msra.mxu0 %v368
    %434 = vmatprep.subr.bf16.mxu0 %v371
    %435 = vmatpush1.bf16.msra.mxu0 %v370
    %436 = vmatprep.subr.bf16.mxu0 %v373
    %437 = vmatpush1.bf16.msra.mxu0 %v372
    %438 = vmatprep.subr.bf16.mxu0 %v375
    %439 = vmatpush1.bf16.msra.mxu0 %v374
    %440 = vmatprep.subr.bf16.mxu0 %v377
    %441 = vmatpush1.bf16.msra.mxu0 %v376
    %442 = vmatprep.subr.bf16.mxu0 %v379
    %443 = vmatpush1.bf16.msra.mxu0 %v378
    %444 = vmatprep.subr.bf16.mxu0 %v381
    %445 = vmatpush1.bf16.msra.mxu0 %v380
    %446 = vmatprep.subr.bf16.mxu0 %v383
    %447 = vmatpush1.bf16.msra.mxu0 %v382
    %448 = vmatprep.subr.bf16.mxu0 %v385
    %449 = vmatpush1.bf16.msra.mxu0 %v384
    %450 = vmatprep.subr.bf16.mxu0 %v387
    %451 = vmatpush1.bf16.msra.mxu0 %v386
    %452 = vmatprep.subr.bf16.mxu0 %v389
    %453 = vmatpush1.bf16.msra.mxu0 %v388
    %454 = vmatprep.mubr.bf16.mxu0 %v211
    %455 = vmatmul.mubr.bf16.gmra.mrb[0].mxu0 %v210
    %v456 = vpop.f32.mrb[0].mxu0
    %v457 = vadd.f32 %v255, %v456
    %v458 = vpop.f32.mrb[0].mxu0
    %v459 = vadd.f32 %v259, %v458
    %v460 = vpop.f32.mrb[0].mxu0
    %v461 = vadd.f32 %v255, %v460
    %v462 = vpop.f32.mrb[0].mxu0
    %v463 = vadd.f32 %v259, %v462
    %464 = vmatprep.mubr.bf16.mxu0 %v213
    %465 = vmatmul.mubr.bf16.gmra.mrb[0].mxu0 %v212
    %v466 = vpop.f32.mrb[0].mxu0
    %v467 = vadd.f32 %v255, %v466
    %v468 = vpop.f32.mrb[0].mxu0
    %v469 = vadd.f32 %v259, %v468
    %v470 = vpop.f32.mrb[0].mxu0
    %v471 = vadd.f32 %v255, %v470
    %v472 = vpop.f32.mrb[0].mxu0
    %v473 = vadd.f32 %v259, %v472
    %474 = vmatprep.mubr.bf16.mxu0 %v215
    %475 = vmatmul.mubr.bf16.gmra.mrb[0].mxu0 %v214
    %v476 = vpop.f32.mrb[0].mxu0
    %v477 = vadd.f32 %v255, %v476
    %v478 = vpop.f32.mrb[0].mxu0
    %v479 = vadd.f32 %v259, %v478
    %v480 = vpop.f32.mrb[0].mxu0
    %v481 = vadd.f32 %v255, %v480
    %v482 = vpop.f32.mrb[0].mxu0
    %v483 = vadd.f32 %v259, %v482
    %484 = vmatprep.mubr.bf16.mxu0 %v217
    %485 = vmatmul.mubr.bf16.gmra.mrb[0].mxu0 %v216
    %v486 = vpop.f32.mrb[0].mxu0
    %v487 = vadd.f32 %v255, %v486
    %v488 = vpop.f32.mrb[0].mxu0
    %v489 = vadd.f32 %v259, %v488
    %v490 = vpop.f32.mrb[0].mxu0
    %v491 = vadd.f32 %v255, %v490
    %v492 = vpop.f32.mrb[0].mxu0
    %v493 = vadd.f32 %v259, %v492
    %494 = vdwg.mxu0
    %v495 = vmax.f32 %v457, 0.0
    %v496 = vmax.f32 %v459, 0.0
    %v497 = vmax.f32 %v461, 0.0
    %v498 = vmax.f32 %v463, 0.0
    %v499 = vmax.f32 %v467, 0.0
    %v500 = vmax.f32 %v469, 0.0
    %v501 = vmax.f32 %v471, 0.0
    %v502 = vmax.f32 %v473, 0.0
    %v503 = vmax.f32 %v477, 0.0
    %v504 = vmax.f32 %v479, 0.0
    %v505 = vmax.f32 %v481, 0.0
    %v506 = vmax.f32 %v483, 0.0
    %v507 = vmax.f32 %v487, 0.0
    %v508 = vmax.f32 %v489, 0.0
    %v509 = vmax.f32 %v491, 0.0
    %v510 = vmax.f32 %v493, 0.0
    %v511 = vpack.c.bf16 %v497, %v495
    %v512 = vpack.c.bf16 %v498, %v496
    %v513 = vpack.c.bf16 %v501, %v499
    %v514 = vpack.c.bf16 %v502, %v500
    %v515 = vpack.c.bf16 %v505, %v503
    %v516 = vpack.c.bf16 %v506, %v504
    %v517 = vpack.c.bf16 %v509, %v507
    %v518 = vpack.c.bf16 %v510, %v508
    %v519 = vld [vmem:[#allocation5] sm:$0xf]
    %v520 = vld [vmem:[#allocation5 + $0x4] sm:$0xf]
    %v521 = vld [vmem:[#allocation5 + $0x8] sm:$0xf]
    %v522 = vld [vmem:[#allocation5 + $0xc] sm:$0xf]
    %v523 = vld [vmem:[#allocation5 + $0x10] sm:$0xf]
    %v524 = vld [vmem:[#allocation5 + $0x14] sm:$0xf]
    %v525 = vld [vmem:[#allocation5 + $0x18] sm:$0xf]
    %v526 = vld [vmem:[#allocation5 + $0x1c] sm:$0xf]
    %v527 = vld [vmem:[#allocation5 + $0x20] sm:$0xf]
    %v528 = vld [vmem:[#allocation5 + $0x24] sm:$0xf]
    %v529 = vld [vmem:[#allocation5 + $0x28] sm:$0xf]
    %v530 = vld [vmem:[#allocation5 + $0x2c] sm:$0xf]
    %v531 = vld [vmem:[#allocation5 + $0x30] sm:$0xf]
    %v532 = vld [vmem:[#allocation5 + $0x34] sm:$0xf]
    %v533 = vld [vmem:[#allocation5 + $0x38] sm:$0xf]
    %v534 = vld [vmem:[#allocation5 + $0x3c] sm:$0xf]
    %v535 = vld [vmem:[#allocation5 + $0x40] sm:$0xf]
    %v536 = vld [vmem:[#allocation5 + $0x44] sm:$0xf]
    %v537 = vld [vmem:[#allocation5 + $0x48] sm:$0xf]
    %v538 = vld [vmem:[#allocation5 + $0x4c] sm:$0xf]
    %v539 = vld [vmem:[#allocation5 + $0x50] sm:$0xf]
    %v540 = vld [vmem:[#allocation5 + $0x54] sm:$0xf]
    %v541 = vld [vmem:[#allocation5 + $0x58] sm:$0xf]
    %v542 = vld [vmem:[#allocation5 + $0x5c] sm:$0xf]
    %v543 = vld [vmem:[#allocation5 + $0x60] sm:$0xf]
    %v544 = vld [vmem:[#allocation5 + $0x64] sm:$0xf]
    %v545 = vld [vmem:[#allocation5 + $0x68] sm:$0xf]
    %v546 = vld [vmem:[#allocation5 + $0x6c] sm:$0xf]
    %v547 = vld [vmem:[#allocation5 + $0x70] sm:$0xf]
    %v548 = vld [vmem:[#allocation5 + $0x74] sm:$0xf]
    %v549 = vld [vmem:[#allocation5 + $0x78] sm:$0xf]
    %v550 = vld [vmem:[#allocation5 + $0x7c] sm:$0xf]
    %v551 = vld [vmem:[%s6] sm:$0x1]
    %v553 = vlaneseq
    %v554 = vshrl.u32 %v553, 7
    %v555 = vsub.s32 0, %v554
    %v556 = vrot.slane %v551, %v555
    %v590 = vunpack.c.l.b16 %v519
    %v591 = vunpack.c.l.b16 %v520
    %v592 = vunpack.c.l.b16 %v521
    %v593 = vunpack.c.l.b16 %v522
    %v594 = vunpack.c.l.b16 %v523
    %v595 = vunpack.c.l.b16 %v524
    %v596 = vunpack.c.l.b16 %v525
    %v597 = vunpack.c.l.b16 %v526
    %v598 = vunpack.c.l.b16 %v527
    %v599 = vunpack.c.l.b16 %v528
    %v600 = vunpack.c.l.b16 %v529
    %v601 = vunpack.c.l.b16 %v530
    %v602 = vunpack.c.l.b16 %v531
    %v603 = vunpack.c.l.b16 %v532
    %v604 = vunpack.c.l.b16 %v533
    %v605 = vunpack.c.l.b16 %v534
    %v606 = vunpack.c.l.b16 %v535
    %v607 = vunpack.c.l.b16 %v536
    %v608 = vunpack.c.l.b16 %v537
    %v609 = vunpack.c.l.b16 %v538
    %v610 = vunpack.c.l.b16 %v539
    %v611 = vunpack.c.l.b16 %v540
    %v612 = vunpack.c.l.b16 %v541
    %v613 = vunpack.c.l.b16 %v542
    %v614 = vunpack.c.l.b16 %v543
    %v615 = vunpack.c.l.b16 %v544
    %v616 = vunpack.c.l.b16 %v545
    %v617 = vunpack.c.l.b16 %v546
    %v618 = vunpack.c.l.b16 %v547
    %v619 = vunpack.c.l.b16 %v548
    %v620 = vunpack.c.l.b16 %v549
    %v621 = vunpack.c.l.b16 %v550
    %v622 = vpack.c.b16 %v591, %v590
    %v623 = vpack.c.b16 %v593, %v592
    %v624 = vpack.c.b16 %v595, %v594
    %v625 = vpack.c.b16 %v597, %v596
    %v626 = vpack.c.b16 %v599, %v598
    %v627 = vpack.c.b16 %v601, %v600
    %v628 = vpack.c.b16 %v603, %v602
    %v629 = vpack.c.b16 %v605, %v604
    %v630 = vpack.c.b16 %v607, %v606
    %v631 = vpack.c.b16 %v609, %v608
    %v632 = vpack.c.b16 %v611, %v610
    %v633 = vpack.c.b16 %v613, %v612
    %v634 = vpack.c.b16 %v615, %v614
    %v635 = vpack.c.b16 %v617, %v616
    %v636 = vpack.c.b16 %v619, %v618
    %v637 = vpack.c.b16 %v621, %v620
    %654 = vmatprep.subr.bf16.mxu0 0
    %655 = vmatpush1.bf16.msra.mxu0 %v622
    %656 = vmatprep.subr.bf16.mxu0 0
    %657 = vmatpush1.bf16.msra.mxu0 %v623
    %658 = vmatprep.subr.bf16.mxu0 0
    %659 = vmatpush1.bf16.msra.mxu0 %v624
    %660 = vmatprep.subr.bf16.mxu0 0
    %661 = vmatpush1.bf16.msra.mxu0 %v625
    %662 = vmatprep.subr.bf16.mxu0 0
    %663 = vmatpush1.bf16.msra.mxu0 %v626
    %664 = vmatprep.subr.bf16.mxu0 0
    %665 = vmatpush1.bf16.msra.mxu0 %v627
    %666 = vmatprep.subr.bf16.mxu0 0
    %667 = vmatpush1.bf16.msra.mxu0 %v628
    %668 = vmatprep.subr.bf16.mxu0 0
    %669 = vmatpush1.bf16.msra.mxu0 %v629
    %670 = vmatprep.subr.bf16.mxu0 0
    %671 = vmatpush1.bf16.msra.mxu0 %v630
    %672 = vmatprep.subr.bf16.mxu0 0
    %673 = vmatpush1.bf16.msra.mxu0 %v631
    %674 = vmatprep.subr.bf16.mxu0 0
    %675 = vmatpush1.bf16.msra.mxu0 %v632
    %676 = vmatprep.subr.bf16.mxu0 0
    %677 = vmatpush1.bf16.msra.mxu0 %v633
    %678 = vmatprep.subr.bf16.mxu0 0
    %679 = vmatpush1.bf16.msra.mxu0 %v634
    %680 = vmatprep.subr.bf16.mxu0 0
    %681 = vmatpush1.bf16.msra.mxu0 %v635
    %682 = vmatprep.subr.bf16.mxu0 0
    %683 = vmatpush1.bf16.msra.mxu0 %v636
    %684 = vmatprep.subr.bf16.mxu0 0
    %685 = vmatpush1.bf16.msra.mxu0 %v637
    %686 = vmatprep.mubr.bf16.mxu0 %v512
    %687 = vmatmul.mubr.bf16.gmra.mrb[0].mxu0 %v511
    %v688 = vpop.f32.mrb[0].mxu0
    %v689 = vadd.f32 %v556, %v688
    %v690 = vpop.f32.mrb[0].mxu0
    %v691 = vpop.f32.mrb[0].mxu0
    %v692 = vadd.f32 %v556, %v691
    %v693 = vpop.f32.mrb[0].mxu0
    %694 = vmatprep.mubr.bf16.mxu0 %v514
    %695 = vmatmul.mubr.bf16.gmra.mrb[0].mxu0 %v513
    %v696 = vpop.f32.mrb[0].mxu0
    %v697 = vadd.f32 %v556, %v696
    %v698 = vpop.f32.mrb[0].mxu0
    %v699 = vpop.f32.mrb[0].mxu0
    %v700 = vadd.f32 %v556, %v699
    %v701 = vpop.f32.mrb[0].mxu0
    %702 = vmatprep.mubr.bf16.mxu0 %v516
    %703 = vmatmul.mubr.bf16.gmra.mrb[0].mxu0 %v515
    %v704 = vpop.f32.mrb[0].mxu0
    %v705 = vadd.f32 %v556, %v704
    %v706 = vpop.f32.mrb[0].mxu0
    %v707 = vpop.f32.mrb[0].mxu0
    %v708 = vadd.f32 %v556, %v707
    %v709 = vpop.f32.mrb[0].mxu0
    %710 = vmatprep.mubr.bf16.mxu0 %v518
    %711 = vmatmul.mubr.bf16.gmra.mrb[0].mxu0 %v517
    %v712 = vpop.f32.mrb[0].mxu0
    %v713 = vadd.f32 %v556, %v712
    %v714 = vpop.f32.mrb[0].mxu0
    %v715 = vpop.f32.mrb[0].mxu0
    %v716 = vadd.f32 %v556, %v715
    %v717 = vpop.f32.mrb[0].mxu0
    %718 = vdwg.mxu0
    %719 = vst [vmem:[#allocation7] sm:$0xff] %v689
    %720 = vst [vmem:[#allocation7 + $0x8] sm:$0xff] %v692
    %721 = vst [vmem:[#allocation7 + $0x10] sm:$0xff] %v697
    %722 = vst [vmem:[#allocation7 + $0x18] sm:$0xff] %v700
    %723 = vst [vmem:[#allocation7 + $0x20] sm:$0xff] %v705
    %724 = vst [vmem:[#allocation7 + $0x28] sm:$0xff] %v708
    %725 = vst [vmem:[#allocation7 + $0x30] sm:$0xff] %v713
    %726 = vst [vmem:[#allocation7 + $0x38] sm:$0xff] %v716
    // Predicated region
    $region38: #{tpu_custom_call.1} parent=1 // pred_check
      _
    $region39: #{tpu_custom_call.1} parent=1 // pred_check_branch
      %728 = sbr.rel (0) target = $region41
    $region40: #{tpu_custom_call.1} parent=1 // pred_region
      %s730 = ssub.s32 1024, 1024
      %731 = vsyncadd [#allocation4], %s730
      %s732 = sshll.u32 [#allocation7], 4
      %s733 = int_to_ptr.vmem [resolvable:$true] %s732
      %738 = dma.vmem_to_hbm [thread:$0]  %s733, 1024, %s7, [#allocation4], 128, 128, 8
    $region41: #{tpu_custom_call.1} parent=1 // pred_fallthru
      _
    // Predicated region
    $region42: #{tpu_custom_call.1} parent=1 // pred_check
      _
    $region43: #{tpu_custom_call.1} parent=1 // pred_check_branch
      %740 = sbr.rel (0) target = $region45
    $region44: #{tpu_custom_call.1} parent=1 // pred_region
      %741 = dma.done [#allocation4], 1024
    $region45: #{tpu_custom_call.1} parent=1 // pred_fallthru
      _
    %742 = vsyncpa [#allocation3], 1
    %743 = vsyncpa [#allocation6], 1
    %744 = vsyncpa [#allocation4], 1

// kernel: tpu_custom_call.1
$region0: #{tpu_custom_call.1}
  #allocation0 [shape = 'u32[]', space=smem, size = 0x4, offset = 0x4, fixed_abs, tag = 'smem constant byte address 0x4 - core index']
  #allocation1 [shape = 'u32[144,128]{1,0:T(1,128)}', space=vmem, size = 0x12000, scoped, tag = 'internal scratch']
  %s0 = inlined_call_operand.vmem [shape: bf16[64,16], index: 0, kind: input, shape index: {}]
  %s1 = inlined_call_operand.vmem [shape: bf16[16,256], index: 1, kind: input, shape index: {}]
  %s2 = inlined_call_operand.vmem [shape: f32[1,256], index: 2, kind: input, shape index: {}]
  %s3 = inlined_call_operand.hbm [shape: bf16[256,256], index: 3, kind: input, shape index: {}]
  %s4 = inlined_call_operand.vmem [shape: f32[1,256], index: 4, kind: input, shape index: {}]
  %s5 = inlined_call_operand.hbm [shape: bf16[256,128], index: 5, kind: input, shape index: {}]
  %s6 = inlined_call_operand.vmem [shape: f32[1,128], index: 6, kind: input, shape index: {}]
  %s7 = inlined_call_operand.hbm [shape: f32[64,128], index: 7, kind: output, shape index: {}]
  %s8 = sld [smem:[#allocation0]]
  $region46: #{tpu_custom_call.1} parent=0
    _
  %s10 = ssub.s32 1, %s8
  %s11 = scalar_select 0, %s10, %s8
  $region1: #{tpu_custom_call.1} parent=0
    #allocation2 [shape = 'u8[131072]{0}', space=vmem, size = 0x20000, scoped, tag = 'input window, operand 3, single buffered']
    #allocation3 [shape = 's32[1]{0}', space=sflag, size = 0x4, scoped, tag = 'scoped memory for tpu_custom_call.1']
    #allocation4 [shape = 's32[1]{0}', space=sflag, size = 0x4, scoped, tag = 'scoped memory for tpu_custom_call.1']
    #allocation5 [shape = 'u8[65536]{0}', space=vmem, size = 0x10000, scoped, tag = 'input window, operand 5, single buffered']
    #allocation6 [shape = 's32[1]{0}', space=sflag, size = 0x4, scoped, tag = 'scoped memory for tpu_custom_call.1']
    #allocation7 [shape = 'u8[32768]{0}', space=vmem, size = 0x8000, scoped, tag = 'output window, operand 0, single buffered']
    %12 = vsyncpa [#allocation3], 0
    %13 = vsyncpa [#allocation6], 0
    %14 = vsyncpa [#allocation4], 0
    // Predicated region
    $region2: #{tpu_custom_call.1} parent=1 // pred_check
      _
    $region3: #{tpu_custom_call.1} parent=1 // pred_check_branch
      %16 = sbr.rel (0) target = $region5
    $region4: #{tpu_custom_call.1} parent=1 // pred_region
      _
    $region5: #{tpu_custom_call.1} parent=1 // pred_fallthru
      _
    // Predicated region
    $region6: #{tpu_custom_call.1} parent=1 // pred_check
      _
    $region7: #{tpu_custom_call.1} parent=1 // pred_check_branch
      %18 = sbr.rel (0) target = $region9
    $region8: #{tpu_custom_call.1} parent=1 // pred_region
      _
    $region9: #{tpu_custom_call.1} parent=1 // pred_fallthru
      _
    // Predicated region
    $region10: #{tpu_custom_call.1} parent=1 // pred_check
      _
    $region11: #{tpu_custom_call.1} parent=1 // pred_check_branch
      %20 = sbr.rel (0) target = $region13
    $region12: #{tpu_custom_call.1} parent=1 // pred_region
      _
    $region13: #{tpu_custom_call.1} parent=1 // pred_fallthru
      _
    // Predicated region
    $region14: #{tpu_custom_call.1} parent=1 // pred_check
      _
    $region15: #{tpu_custom_call.1} parent=1 // pred_check_branch
      %22 = sbr.rel (0) target = $region17
    $region16: #{tpu_custom_call.1} parent=1 // pred_region
      %s24 = ssub.s32 4096, 4096
      %25 = vsyncadd [#allocation3], %s24
      %s26 = sshll.u32 [#allocation2], 4
      %s27 = int_to_ptr.vmem [resolvable:$true] %s26
      %32 = dma.hbm_to_vmem [thread:$0]  %s3, 4096, %s27, [#allocation3], 128, 128, 8
    $region17: #{tpu_custom_call.1} parent=1 // pred_fallthru
      _
    // Predicated region
    $region18: #{tpu_custom_call.1} parent=1 // pred_check
      _
    $region19: #{tpu_custom_call.1} parent=1 // pred_check_branch
      %34 = sbr.rel (0) target = $region21
    $region20: #{tpu_custom_call.1} parent=1 // pred_region
      _
    $region21: #{tpu_custom_call.1} parent=1 // pred_fallthru
      _
    // Predicated region
    $region22: #{tpu_custom_call.1} parent=1 // pred_check
      _
    $region23: #{tpu_custom_call.1} parent=1 // pred_check_branch
      %36 = sbr.rel (0) target = $region25
    $region24: #{tpu_custom_call.1} parent=1 // pred_region
      %s38 = ssub.s32 2048, 2048
      %39 = vsyncadd [#allocation6], %s38
      %s40 = sshll.u32 [#allocation5], 4
      %s41 = int_to_ptr.vmem [resolvable:$true] %s40
      %46 = dma.hbm_to_vmem [thread:$0]  %s5, 2048, %s41, [#allocation6], 64, 64, 4
    $region25: #{tpu_custom_call.1} parent=1 // pred_fallthru
      _
    // Predicated region
    $region26: #{tpu_custom_call.1} parent=1 // pred_check
      _
    $region27: #{tpu_custom_call.1} parent=1 // pred_check_branch
      %48 = sbr.rel (0) target = $region29
    $region28: #{tpu_custom_call.1} parent=1 // pred_region
      _
    $region29: #{tpu_custom_call.1} parent=1 // pred_fallthru
      _
    // Predicated region
    $region30: #{tpu_custom_call.1} parent=1 // pred_check
      _
    $region31: #{tpu_custom_call.1} parent=1 // pred_check_branch
      %50 = sbr.rel (0) target = $region33
    $region32: #{tpu_custom_call.1} parent=1 // pred_region
      %51 = dma.done [#allocation3], 4096
    $region33: #{tpu_custom_call.1} parent=1 // pred_fallthru
      _
    // Predicated region
    $region34: #{tpu_custom_call.1} parent=1 // pred_check
      _
    $region35: #{tpu_custom_call.1} parent=1 // pred_check_branch
      %53 = sbr.rel (0) target = $region37
    $region36: #{tpu_custom_call.1} parent=1 // pred_region
      %54 = dma.done [#allocation6], 2048
    $region37: #{tpu_custom_call.1} parent=1 // pred_fallthru
      _
    %v56 = vld [vmem:[%s0] sm:$0xf]
    %v57 = vld [vmem:[%s0 + $0x4] sm:$0xf]
    %v58 = vld [vmem:[%s0 + $0x8] sm:$0xf]
    %v59 = vld [vmem:[%s0 + $0xc] sm:$0xf]
    %v60 = vld [vmem:[%s0 + $0x10] sm:$0xf]
    %v61 = vld [vmem:[%s0 + $0x14] sm:$0xf]
    %v62 = vld [vmem:[%s0 + $0x18] sm:$0xf]
    %v63 = vld [vmem:[%s0 + $0x1c] sm:$0xf]
    %v64 = vld [vmem:[%s1] sm:$0xff]
    %v65 = vld [vmem:[%s1 + $0x8] sm:$0xff]
    %v66 = vld [vmem:[%s2] sm:$0x3]
    %v68 = vlaneseq
    %v69 = vshrl.u32 %v68, 7
    %v70 = vsub.s32 0, %v69
    %v71 = vrot.slane %v66, %v70
    %v72 = vlaneseq
    %v73 = vshrl.u32 %v72, 7
    %v74 = vsub.s32 1, %v73
    %v75 = vrot.slane %v66, %v74
    %v86 = vunpack.c.l.b16 %v56
    %v87 = vunpack.c.l.b16 %v57
    %v88 = vunpack.c.l.b16 %v58
    %v89 = vunpack.c.l.b16 %v59
    %v90 = vunpack.c.l.b16 %v60
    %v91 = vunpack.c.l.b16 %v61
    %v92 = vunpack.c.l.b16 %v62
    %v93 = vunpack.c.l.b16 %v63
    %v94 = vpack.c.b16 %v87, %v86
    %v95 = vpack.c.b16 %v89, %v88
    %v96 = vpack.c.b16 %v91, %v90
    %v97 = vpack.c.b16 %v93, %v92
    %v100 = vunpack.c.l.b16 %v64
    %v101 = vunpack.c.h.b16 %v64
    %v102 = vunpack.c.l.b16 %v65
    %v103 = vunpack.c.h.b16 %v65
    %v104 = vpack.c.b16 %v102, %v100
    %v105 = vpack.c.b16 %v103, %v101
    %vm108 = vcmask 130048
    %v110 = vsel %vm108, %v94, 0
    %v113 = vsel %vm108, %v95, 0
    %v116 = vsel %vm108, %v96, 0
    %v119 = vsel %vm108, %v97, 0
    %121 = vmatprep.subr.bf16.mxu0 %v105
    %122 = vmatpush1.bf16.msra.mxu0 %v104
    %123 = vmatprep.subr.bf16.mxu0 0
    %124 = vmatpush1.bf16.msra.mxu0 0
    %125 = vmatprep.subr.bf16.mxu0 0
    %126 = vmatpush1.bf16.msra.mxu0 0
    %127 = vmatprep.subr.bf16.mxu0 0
    %128 = vmatpush1.bf16.msra.mxu0 0
    %129 = vmatprep.subr.bf16.mxu0 0
    %130 = vmatpush1.bf16.msra.mxu0 0
    %131 = vmatprep.subr.bf16.mxu0 0
    %132 = vmatpush1.bf16.msra.mxu0 0
    %133 = vmatprep.subr.bf16.mxu0 0
    %134 = vmatpush1.bf16.msra.mxu0 0
    %135 = vmatprep.subr.bf16.mxu0 0
    %136 = vmatpush1.bf16.msra.mxu0 0
    %137 = vmatprep.subr.bf16.mxu0 0
    %138 = vmatpush1.bf16.msra.mxu0 0
    %139 = vmatprep.subr.bf16.mxu0 0
    %140 = vmatpush1.bf16.msra.mxu0 0
    %141 = vmatprep.subr.bf16.mxu0 0
    %142 = vmatpush1.bf16.msra.mxu0 0
    %143 = vmatprep.subr.bf16.mxu0 0
    %144 = vmatpush1.bf16.msra.mxu0 0
    %145 = vmatprep.subr.bf16.mxu0 0
    %146 = vmatpush1.bf16.msra.mxu0 0
    %147 = vmatprep.subr.bf16.mxu0 0
    %148 = vmatpush1.bf16.msra.mxu0 0
    %149 = vmatprep.subr.bf16.mxu0 0
    %150 = vmatpush1.bf16.msra.mxu0 0
    %151 = vmatprep.subr.bf16.mxu0 0
    %152 = vmatpush1.bf16.msra.mxu0 0
    %153 = vmatprep.mubr.bf16.mxu0 0
    %154 = vmatmul.mubr.bf16.gmra.mrb[0].mxu0 %v110
    %v155 = vpop.f32.mrb[0].mxu0
    %v156 = vadd.f32 %v71, %v155
    %v157 = vpop.f32.mrb[0].mxu0
    %v158 = vadd.f32 %v75, %v157
    %v159 = vpop.f32.mrb[0].mxu0
    %v160 = vadd.f32 %v71, %v159
    %v161 = vpop.f32.mrb[0].mxu0
    %v162 = vadd.f32 %v75, %v161
    %163 = vmatprep.mubr.bf16.mxu0 0
    %164 = vmatmul.mubr.bf16.gmra.mrb[0].mxu0 %v113
    %v165 = vpop.f32.mrb[0].mxu0
    %v166 = vadd.f32 %v71, %v165
    %v167 = vpop.f32.mrb[0].mxu0
    %v168 = vadd.f32 %v75, %v167
    %v169 = vpop.f32.mrb[0].mxu0
    %v170 = vadd.f32 %v71, %v169
    %v171 = vpop.f32.mrb[0].mxu0
    %v172 = vadd.f32 %v75, %v171
    %173 = vmatprep.mubr.bf16.mxu0 0
    %174 = vmatmul.mubr.bf16.gmra.mrb[0].mxu0 %v116
    %v175 = vpop.f32.mrb[0].mxu0
    %v176 = vadd.f32 %v71, %v175
    %v177 = vpop.f32.mrb[0].mxu0
    %v178 = vadd.f32 %v75, %v177
    %v179 = vpop.f32.mrb[0].mxu0
    %v180 = vadd.f32 %v71, %v179
    %v181 = vpop.f32.mrb[0].mxu0
    %v182 = vadd.f32 %v75, %v181
    %183 = vmatprep.mubr.bf16.mxu0 0
    %184 = vmatmul.mubr.bf16.gmra.mrb[0].mxu0 %v119
    %v185 = vpop.f32.mrb[0].mxu0
    %v186 = vadd.f32 %v71, %v185
    %v187 = vpop.f32.mrb[0].mxu0
    %v188 = vadd.f32 %v75, %v187
    %v189 = vpop.f32.mrb[0].mxu0
    %v190 = vadd.f32 %v71, %v189
    %v191 = vpop.f32.mrb[0].mxu0
    %v192 = vadd.f32 %v75, %v191
    %193 = vdwg.mxu0
    %v194 = vmax.f32 %v156, 0.0
    %v195 = vmax.f32 %v158, 0.0
    %v196 = vmax.f32 %v160, 0.0
    %v197 = vmax.f32 %v162, 0.0
    %v198 = vmax.f32 %v166, 0.0
    %v199 = vmax.f32 %v168, 0.0
    %v200 = vmax.f32 %v170, 0.0
    %v201 = vmax.f32 %v172, 0.0
    %v202 = vmax.f32 %v176, 0.0
    %v203 = vmax.f32 %v178, 0.0
    %v204 = vmax.f32 %v180, 0.0
    %v205 = vmax.f32 %v182, 0.0
    %v206 = vmax.f32 %v186, 0.0
    %v207 = vmax.f32 %v188, 0.0
    %v208 = vmax.f32 %v190, 0.0
    %v209 = vmax.f32 %v192, 0.0
    %v210 = vpack.c.bf16 %v196, %v194
    %v211 = vpack.c.bf16 %v197, %v195
    %v212 = vpack.c.bf16 %v200, %v198
    %v213 = vpack.c.bf16 %v201, %v199
    %v214 = vpack.c.bf16 %v204, %v202
    %v215 = vpack.c.bf16 %v205, %v203
    %v216 = vpack.c.bf16 %v208, %v206
    %v217 = vpack.c.bf16 %v209, %v207
    %v218 = vld [vmem:[#allocation2] sm:$0xff]
    %v219 = vld [vmem:[#allocation2 + $0x8] sm:$0xff]
    %v220 = vld [vmem:[#allocation2 + $0x10] sm:$0xff]
    %v221 = vld [vmem:[#allocation2 + $0x18] sm:$0xff]
    %v222 = vld [vmem:[#allocation2 + $0x20] sm:$0xff]
    %v223 = vld [vmem:[#allocation2 + $0x28] sm:$0xff]
    %v224 = vld [vmem:[#allocation2 + $0x30] sm:$0xff]
    %v225 = vld [vmem:[#allocation2 + $0x38] sm:$0xff]
    %v226 = vld [vmem:[#allocation2 + $0x40] sm:$0xff]
    %v227 = vld [vmem:[#allocation2 + $0x48] sm:$0xff]
    %v228 = vld [vmem:[#allocation2 + $0x50] sm:$0xff]
    %v229 = vld [vmem:[#allocation2 + $0x58] sm:$0xff]
    %v230 = vld [vmem:[#allocation2 + $0x60] sm:$0xff]
    %v231 = vld [vmem:[#allocation2 + $0x68] sm:$0xff]
    %v232 = vld [vmem:[#allocation2 + $0x70] sm:$0xff]
    %v233 = vld [vmem:[#allocation2 + $0x78] sm:$0xff]
    %v234 = vld [vmem:[#allocation2 + $0x80] sm:$0xff]
    %v235 = vld [vmem:[#allocation2 + $0x88] sm:$0xff]
    %v236 = vld [vmem:[#allocation2 + $0x90] sm:$0xff]
    %v237 = vld [vmem:[#allocation2 + $0x98] sm:$0xff]
    %v238 = vld [vmem:[#allocation2 + $0xa0] sm:$0xff]
    %v239 = vld [vmem:[#allocation2 + $0xa8] sm:$0xff]
    %v240 = vld [vmem:[#allocation2 + $0xb0] sm:$0xff]
    %v241 = vld [vmem:[#allocation2 + $0xb8] sm:$0xff]
    %v242 = vld [vmem:[#allocation2 + $0xc0] sm:$0xff]
    %v243 = vld [vmem:[#allocation2 + $0xc8] sm:$0xff]
    %v244 = vld [vmem:[#allocation2 + $0xd0] sm:$0xff]
    %v245 = vld [vmem:[#allocation2 + $0xd8] sm:$0xff]
    %v246 = vld [vmem:[#allocation2 + $0xe0] sm:$0xff]
    %v247 = vld [vmem:[#allocation2 + $0xe8] sm:$0xff]
    %v248 = vld [vmem:[#allocation2 + $0xf0] sm:$0xff]
    %v249 = vld [vmem:[#allocation2 + $0xf8] sm:$0xff]
    %v250 = vld [vmem:[%s4] sm:$0x3]
    %v252 = vlaneseq
    %v253 = vshrl.u32 %v252, 7
    %v254 = vsub.s32 0, %v253
    %v255 = vrot.slane %v250, %v254
    %v256 = vlaneseq
    %v257 = vshrl.u32 %v256, 7
    %v258 = vsub.s32 1, %v257
    %v259 = vrot.slane %v250, %v258
    %v294 = vunpack.c.l.b16 %v218
    %v295 = vunpack.c.h.b16 %v218
    %v296 = vunpack.c.l.b16 %v219
    %v297 = vunpack.c.h.b16 %v219
    %v298 = vunpack.c.l.b16 %v220
    %v299 = vunpack.c.h.b16 %v220
    %v300 = vunpack.c.l.b16 %v221
    %v301 = vunpack.c.h.b16 %v221
    %v302 = vunpack.c.l.b16 %v222
    %v303 = vunpack.c.h.b16 %v222
    %v304 = vunpack.c.l.b16 %v223
    %v305 = vunpack.c.h.b16 %v223
    %v306 = vunpack.c.l.b16 %v224
    %v307 = vunpack.c.h.b16 %v224
    %v308 = vunpack.c.l.b16 %v225
    %v309 = vunpack.c.h.b16 %v225
    %v310 = vunpack.c.l.b16 %v226
    %v311 = vunpack.c.h.b16 %v226
    %v312 = vunpack.c.l.b16 %v227
    %v313 = vunpack.c.h.b16 %v227
    %v314 = vunpack.c.l.b16 %v228
    %v315 = vunpack.c.h.b16 %v228
    %v316 = vunpack.c.l.b16 %v229
    %v317 = vunpack.c.h.b16 %v229
    %v318 = vunpack.c.l.b16 %v230
    %v319 = vunpack.c.h.b16 %v230
    %v320 = vunpack.c.l.b16 %v231
    %v321 = vunpack.c.h.b16 %v231
    %v322 = vunpack.c.l.b16 %v232
    %v323 = vunpack.c.h.b16 %v232
    %v324 = vunpack.c.l.b16 %v233
    %v325 = vunpack.c.h.b16 %v233
    %v326 = vunpack.c.l.b16 %v234
    %v327 = vunpack.c.h.b16 %v234
    %v328 = vunpack.c.l.b16 %v235
    %v329 = vunpack.c.h.b16 %v235
    %v330 = vunpack.c.l.b16 %v236
    %v331 = vunpack.c.h.b16 %v236
    %v332 = vunpack.c.l.b16 %v237
    %v333 = vunpack.c.h.b16 %v237
    %v334 = vunpack.c.l.b16 %v238
    %v335 = vunpack.c.h.b16 %v238
    %v336 = vunpack.c.l.b16 %v239
    %v337 = vunpack.c.h.b16 %v239
    %v338 = vunpack.c.l.b16 %v240
    %v339 = vunpack.c.h.b16 %v240
    %v340 = vunpack.c.l.b16 %v241
    %v341 = vunpack.c.h.b16 %v241
    %v342 = vunpack.c.l.b16 %v242
    %v343 = vunpack.c.h.b16 %v242
    %v344 = vunpack.c.l.b16 %v243
    %v345 = vunpack.c.h.b16 %v243
    %v346 = vunpack.c.l.b16 %v244
    %v347 = vunpack.c.h.b16 %v244
    %v348 = vunpack.c.l.b16 %v245
    %v349 = vunpack.c.h.b16 %v245
    %v350 = vunpack.c.l.b16 %v246
    %v351 = vunpack.c.h.b16 %v246
    %v352 = vunpack.c.l.b16 %v247
    %v353 = vunpack.c.h.b16 %v247
    %v354 = vunpack.c.l.b16 %v248
    %v355 = vunpack.c.h.b16 %v248
    %v356 = vunpack.c.l.b16 %v249
    %v357 = vunpack.c.h.b16 %v249
    %v358 = vpack.c.b16 %v296, %v294
    %v359 = vpack.c.b16 %v297, %v295
    %v360 = vpack.c.b16 %v300, %v298
    %v361 = vpack.c.b16 %v301, %v299
    %v362 = vpack.c.b16 %v304, %v302
    %v363 = vpack.c.b16 %v305, %v303
    %v364 = vpack.c.b16 %v308, %v306
    %v365 = vpack.c.b16 %v309, %v307
    %v366 = vpack.c.b16 %v312, %v310
    %v367 = vpack.c.b16 %v313, %v311
    %v368 = vpack.c.b16 %v316, %v314
    %v369 = vpack.c.b16 %v317, %v315
    %v370 = vpack.c.b16 %v320, %v318
    %v371 = vpack.c.b16 %v321, %v319
    %v372 = vpack.c.b16 %v324, %v322
    %v373 = vpack.c.b16 %v325, %v323
    %v374 = vpack.c.b16 %v328, %v326
    %v375 = vpack.c.b16 %v329, %v327
    %v376 = vpack.c.b16 %v332, %v330
    %v377 = vpack.c.b16 %v333, %v331
    %v378 = vpack.c.b16 %v336, %v334
    %v379 = vpack.c.b16 %v337, %v335
    %v380 = vpack.c.b16 %v340, %v338
    %v381 = vpack.c.b16 %v341, %v339
    %v382 = vpack.c.b16 %v344, %v342
    %v383 = vpack.c.b16 %v345, %v343
    %v384 = vpack.c.b16 %v348, %v346
    %v385 = vpack.c.b16 %v349, %v347
    %v386 = vpack.c.b16 %v352, %v350
    %v387 = vpack.c.b16 %v353, %v351
    %v388 = vpack.c.b16 %v356, %v354
    %v389 = vpack.c.b16 %v357, %v355
    %422 = vmatprep.subr.bf16.mxu0 %v359
    %423 = vmatpush1.bf16.msra.mxu0 %v358
    %424 = vmatprep.subr.bf16.mxu0 %v361
    %425 = vmatpush1.bf16.msra.mxu0 %v360
    %426 = vmatprep.subr.bf16.mxu0 %v363
    %427 = vmatpush1.bf16.msra.mxu0 %v362
    %428 = vmatprep.subr.bf16.mxu0 %v365
    %429 = vmatpush1.bf16.msra.mxu0 %v364
    %430 = vmatprep.subr.bf16.mxu0 %v367
    %431 = vmatpush1.bf16.msra.mxu0 %v366
    %432 = vmatprep.subr.bf16.mxu0 %v369
    %433 = vmatpush1.bf16.msra.mxu0 %v368
    %434 = vmatprep.subr.bf16.mxu0 %v371
    %435 = vmatpush1.bf16.msra.mxu0 %v370
    %436 = vmatprep.subr.bf16.mxu0 %v373
    %437 = vmatpush1.bf16.msra.mxu0 %v372
    %438 = vmatprep.subr.bf16.mxu0 %v375
    %439 = vmatpush1.bf16.msra.mxu0 %v374
    %440 = vmatprep.subr.bf16.mxu0 %v377
    %441 = vmatpush1.bf16.msra.mxu0 %v376
    %442 = vmatprep.subr.bf16.mxu0 %v379
    %443 = vmatpush1.bf16.msra.mxu0 %v378
    %444 = vmatprep.subr.bf16.mxu0 %v381
    %445 = vmatpush1.bf16.msra.mxu0 %v380
    %446 = vmatprep.subr.bf16.mxu0 %v383
    %447 = vmatpush1.bf16.msra.mxu0 %v382
    %448 = vmatprep.subr.bf16.mxu0 %v385
    %449 = vmatpush1.bf16.msra.mxu0 %v384
    %450 = vmatprep.subr.bf16.mxu0 %v387
    %451 = vmatpush1.bf16.msra.mxu0 %v386
    %452 = vmatprep.subr.bf16.mxu0 %v389
    %453 = vmatpush1.bf16.msra.mxu0 %v388
    %454 = vmatprep.mubr.bf16.mxu0 %v211
    %455 = vmatmul.mubr.bf16.gmra.mrb[0].mxu0 %v210
    %v456 = vpop.f32.mrb[0].mxu0
    %v457 = vadd.f32 %v255, %v456
    %v458 = vpop.f32.mrb[0].mxu0
    %v459 = vadd.f32 %v259, %v458
    %v460 = vpop.f32.mrb[0].mxu0
    %v461 = vadd.f32 %v255, %v460
    %v462 = vpop.f32.mrb[0].mxu0
    %v463 = vadd.f32 %v259, %v462
    %464 = vmatprep.mubr.bf16.mxu0 %v213
    %465 = vmatmul.mubr.bf16.gmra.mrb[0].mxu0 %v212
    %v466 = vpop.f32.mrb[0].mxu0
    %v467 = vadd.f32 %v255, %v466
    %v468 = vpop.f32.mrb[0].mxu0
    %v469 = vadd.f32 %v259, %v468
    %v470 = vpop.f32.mrb[0].mxu0
    %v471 = vadd.f32 %v255, %v470
    %v472 = vpop.f32.mrb[0].mxu0
    %v473 = vadd.f32 %v259, %v472
    %474 = vmatprep.mubr.bf16.mxu0 %v215
    %475 = vmatmul.mubr.bf16.gmra.mrb[0].mxu0 %v214
    %v476 = vpop.f32.mrb[0].mxu0
    %v477 = vadd.f32 %v255, %v476
    %v478 = vpop.f32.mrb[0].mxu0
    %v479 = vadd.f32 %v259, %v478
    %v480 = vpop.f32.mrb[0].mxu0
    %v481 = vadd.f32 %v255, %v480
    %v482 = vpop.f32.mrb[0].mxu0
    %v483 = vadd.f32 %v259, %v482
    %484 = vmatprep.mubr.bf16.mxu0 %v217
    %485 = vmatmul.mubr.bf16.gmra.mrb[0].mxu0 %v216
    %v486 = vpop.f32.mrb[0].mxu0
    %v487 = vadd.f32 %v255, %v486
    %v488 = vpop.f32.mrb[0].mxu0
    %v489 = vadd.f32 %v259, %v488
    %v490 = vpop.f32.mrb[0].mxu0
    %v491 = vadd.f32 %v255, %v490
    %v492 = vpop.f32.mrb[0].mxu0
    %v493 = vadd.f32 %v259, %v492
    %494 = vdwg.mxu0
    %v495 = vmax.f32 %v457, 0.0
    %v496 = vmax.f32 %v459, 0.0
    %v497 = vmax.f32 %v461, 0.0
    %v498 = vmax.f32 %v463, 0.0
    %v499 = vmax.f32 %v467, 0.0
    %v500 = vmax.f32 %v469, 0.0
    %v501 = vmax.f32 %v471, 0.0
    %v502 = vmax.f32 %v473, 0.0
    %v503 = vmax.f32 %v477, 0.0
    %v504 = vmax.f32 %v479, 0.0
    %v505 = vmax.f32 %v481, 0.0
    %v506 = vmax.f32 %v483, 0.0
    %v507 = vmax.f32 %v487, 0.0
    %v508 = vmax.f32 %v489, 0.0
    %v509 = vmax.f32 %v491, 0.0
    %v510 = vmax.f32 %v493, 0.0
    %v511 = vpack.c.bf16 %v497, %v495
    %v512 = vpack.c.bf16 %v498, %v496
    %v513 = vpack.c.bf16 %v501, %v499
    %v514 = vpack.c.bf16 %v502, %v500
    %v515 = vpack.c.bf16 %v505, %v503
    %v516 = vpack.c.bf16 %v506, %v504
    %v517 = vpack.c.bf16 %v509, %v507
    %v518 = vpack.c.bf16 %v510, %v508
    %v519 = vld [vmem:[#allocation5] sm:$0xf]
    %v520 = vld [vmem:[#allocation5 + $0x4] sm:$0xf]
    %v521 = vld [vmem:[#allocation5 + $0x8] sm:$0xf]
    %v522 = vld [vmem:[#allocation5 + $0xc] sm:$0xf]
    %v523 = vld [vmem:[#allocation5 + $0x10] sm:$0xf]
    %v524 = vld [vmem:[#allocation5 + $0x14] sm:$0xf]
    %v525 = vld [vmem:[#allocation5 + $0x18] sm:$0xf]
    %v526 = vld [vmem:[#allocation5 + $0x1c] sm:$0xf]
    %v527 = vld [vmem:[#allocation5 + $0x20] sm:$0xf]
    %v528 = vld [vmem:[#allocation5 + $0x24] sm:$0xf]
    %v529 = vld [vmem:[#allocation5 + $0x28] sm:$0xf]
    %v530 = vld [vmem:[#allocation5 + $0x2c] sm:$0xf]
    %v531 = vld [vmem:[#allocation5 + $0x30] sm:$0xf]
    %v532 = vld [vmem:[#allocation5 + $0x34] sm:$0xf]
    %v533 = vld [vmem:[#allocation5 + $0x38] sm:$0xf]
    %v534 = vld [vmem:[#allocation5 + $0x3c] sm:$0xf]
    %v535 = vld [vmem:[#allocation5 + $0x40] sm:$0xf]
    %v536 = vld [vmem:[#allocation5 + $0x44] sm:$0xf]
    %v537 = vld [vmem:[#allocation5 + $0x48] sm:$0xf]
    %v538 = vld [vmem:[#allocation5 + $0x4c] sm:$0xf]
    %v539 = vld [vmem:[#allocation5 + $0x50] sm:$0xf]
    %v540 = vld [vmem:[#allocation5 + $0x54] sm:$0xf]
    %v541 = vld [vmem:[#allocation5 + $0x58] sm:$0xf]
    %v542 = vld [vmem:[#allocation5 + $0x5c] sm:$0xf]
    %v543 = vld [vmem:[#allocation5 + $0x60] sm:$0xf]
    %v544 = vld [vmem:[#allocation5 + $0x64] sm:$0xf]
    %v545 = vld [vmem:[#allocation5 + $0x68] sm:$0xf]
    %v546 = vld [vmem:[#allocation5 + $0x6c] sm:$0xf]
    %v547 = vld [vmem:[#allocation5 + $0x70] sm:$0xf]
    %v548 = vld [vmem:[#allocation5 + $0x74] sm:$0xf]
    %v549 = vld [vmem:[#allocation5 + $0x78] sm:$0xf]
    %v550 = vld [vmem:[#allocation5 + $0x7c] sm:$0xf]
    %v551 = vld [vmem:[%s6] sm:$0x1]
    %v553 = vlaneseq
    %v554 = vshrl.u32 %v553, 7
    %v555 = vsub.s32 0, %v554
    %v556 = vrot.slane %v551, %v555
    %v590 = vunpack.c.l.b16 %v519
    %v591 = vunpack.c.l.b16 %v520
    %v592 = vunpack.c.l.b16 %v521
    %v593 = vunpack.c.l.b16 %v522
    %v594 = vunpack.c.l.b16 %v523
    %v595 = vunpack.c.l.b16 %v524
    %v596 = vunpack.c.l.b16 %v525
    %v597 = vunpack.c.l.b16 %v526
    %v598 = vunpack.c.l.b16 %v527
    %v599 = vunpack.c.l.b16 %v528
    %v600 = vunpack.c.l.b16 %v529
    %v601 = vunpack.c.l.b16 %v530
    %v602 = vunpack.c.l.b16 %v531
    %v603 = vunpack.c.l.b16 %v532
    %v604 = vunpack.c.l.b16 %v533
    %v605 = vunpack.c.l.b16 %v534
    %v606 = vunpack.c.l.b16 %v535
    %v607 = vunpack.c.l.b16 %v536
    %v608 = vunpack.c.l.b16 %v537
    %v609 = vunpack.c.l.b16 %v538
    %v610 = vunpack.c.l.b16 %v539
    %v611 = vunpack.c.l.b16 %v540
    %v612 = vunpack.c.l.b16 %v541
    %v613 = vunpack.c.l.b16 %v542
    %v614 = vunpack.c.l.b16 %v543
    %v615 = vunpack.c.l.b16 %v544
    %v616 = vunpack.c.l.b16 %v545
    %v617 = vunpack.c.l.b16 %v546
    %v618 = vunpack.c.l.b16 %v547
    %v619 = vunpack.c.l.b16 %v548
    %v620 = vunpack.c.l.b16 %v549
    %v621 = vunpack.c.l.b16 %v550
    %v622 = vpack.c.b16 %v591, %v590
    %v623 = vpack.c.b16 %v593, %v592
    %v624 = vpack.c.b16 %v595, %v594
    %v625 = vpack.c.b16 %v597, %v596
    %v626 = vpack.c.b16 %v599, %v598
    %v627 = vpack.c.b16 %v601, %v600
    %v628 = vpack.c.b16 %v603, %v602
    %v629 = vpack.c.b16 %v605, %v604
    %v630 = vpack.c.b16 %v607, %v606
    %v631 = vpack.c.b16 %v609, %v608
    %v632 = vpack.c.b16 %v611, %v610
    %v633 = vpack.c.b16 %v613, %v612
    %v634 = vpack.c.b16 %v615, %v614
    %v635 = vpack.c.b16 %v617, %v616
    %v636 = vpack.c.b16 %v619, %v618
    %v637 = vpack.c.b16 %v621, %v620
    %654 = vmatprep.subr.bf16.mxu0 0
    %655 = vmatpush1.bf16.msra.mxu0 %v622
    %656 = vmatprep.subr.bf16.mxu0 0
    %657 = vmatpush1.bf16.msra.mxu0 %v623
    %658 = vmatprep.subr.bf16.mxu0 0
    %659 = vmatpush1.bf16.msra.mxu0 %v624
    %660 = vmatprep.subr.bf16.mxu0 0
    %661 = vmatpush1.bf16.msra.mxu0 %v625
    %662 = vmatprep.subr.bf16.mxu0 0
    %663 = vmatpush1.bf16.msra.mxu0 %v626
    %664 = vmatprep.subr.bf16.mxu0 0
    %665 = vmatpush1.bf16.msra.mxu0 %v627
    %666 = vmatprep.subr.bf16.mxu0 0
    %667 = vmatpush1.bf16.msra.mxu0 %v628
    %668 = vmatprep.subr.bf16.mxu0 0
    %669 = vmatpush1.bf16.msra.mxu0 %v629
    %670 = vmatprep.subr.bf16.mxu0 0
    %671 = vmatpush1.bf16.msra.mxu0 %v630
    %672 = vmatprep.subr.bf16.mxu0 0
    %673 = vmatpush1.bf16.msra.mxu0 %v631
    %674 = vmatprep.subr.bf16.mxu0 0
    %675 = vmatpush1.bf16.msra.mxu0 %v632
    %676 = vmatprep.subr.bf16.mxu0 0
    %677 = vmatpush1.bf16.msra.mxu0 %v633
    %678 = vmatprep.subr.bf16.mxu0 0
    %679 = vmatpush1.bf16.msra.mxu0 %v634
    %680 = vmatprep.subr.bf16.mxu0 0
    %681 = vmatpush1.bf16.msra.mxu0 %v635
    %682 = vmatprep.subr.bf16.mxu0 0
    %683 = vmatpush1.bf16.msra.mxu0 %v636
    %684 = vmatprep.subr.bf16.mxu0 0
    %685 = vmatpush1.bf16.msra.mxu0 %v637
    %686 = vmatprep.mubr.bf16.mxu0 %v512
    %687 = vmatmul.mubr.bf16.gmra.mrb[0].mxu0 %v511
    %v688 = vpop.f32.mrb[0].mxu0
    %v689 = vadd.f32 %v556, %v688
    %v690 = vpop.f32.mrb[0].mxu0
    %v691 = vpop.f32.mrb[0].mxu0
    %v692 = vadd.f32 %v556, %v691
    %v693 = vpop.f32.mrb[0].mxu0
    %694 = vmatprep.mubr.bf16.mxu0 %v514
    %695 = vmatmul.mubr.bf16.gmra.mrb[0].mxu0 %v513
    %v696 = vpop.f32.mrb[0].mxu0
    %v697 = vadd.f32 %v556, %v696
    %v698 = vpop.f32.mrb[0].mxu0
    %v699 = vpop.f32.mrb[0].mxu0
    %v700 = vadd.f32 %v556, %v699
    %v701 = vpop.f32.mrb[0].mxu0
    %702 = vmatprep.mubr.bf16.mxu0 %v516
    %703 = vmatmul.mubr.bf16.gmra.mrb[0].mxu0 %v515
    %v704 = vpop.f32.mrb[0].mxu0
    %v705 = vadd.f32 %v556, %v704
    %v706 = vpop.f32.mrb[0].mxu0
    %v707 = vpop.f32.mrb[0].mxu0
    %v708 = vadd.f32 %v556, %v707
    %v709 = vpop.f32.mrb[0].mxu0
    %710 = vmatprep.mubr.bf16.mxu0 %v518
    %711 = vmatmul.mubr.bf16.gmra.mrb[0].mxu0 %v517
    %v712 = vpop.f32.mrb[0].mxu0
    %v713 = vadd.f32 %v556, %v712
    %v714 = vpop.f32.mrb[0].mxu0
    %v715 = vpop.f32.mrb[0].mxu0
    %v716 = vadd.f32 %v556, %v715
    %v717 = vpop.f32.mrb[0].mxu0
    %718 = vdwg.mxu0
    %719 = vst [vmem:[#allocation7] sm:$0xff] %v689
    %720 = vst [vmem:[#allocation7 + $0x8] sm:$0xff] %v692
    %721 = vst [vmem:[#allocation7 + $0x10] sm:$0xff] %v697
    %722 = vst [vmem:[#allocation7 + $0x18] sm:$0xff] %v700
    %723 = vst [vmem:[#allocation7 + $0x20] sm:$0xff] %v705
    %724 = vst [vmem:[#allocation7 + $0x28] sm:$0xff] %v708
    %725 = vst [vmem:[#allocation7 + $0x30] sm:$0xff] %v713
    %726 = vst [vmem:[#allocation7 + $0x38] sm:$0xff] %v716
    // Predicated region
    $region38: #{tpu_custom_call.1} parent=1 // pred_check
      _
    $region39: #{tpu_custom_call.1} parent=1 // pred_check_branch
      %728 = sbr.rel (0) target = $region41
    $region40: #{tpu_custom_call.1} parent=1 // pred_region
      %s730 = ssub.s32 1024, 1024
      %731 = vsyncadd [#allocation4], %s730
      %s732 = sshll.u32 [#allocation7], 4
      %s733 = int_to_ptr.vmem [resolvable:$true] %s732
      %738 = dma.vmem_to_hbm [thread:$0]  %s733, 1024, %s7, [#allocation4], 128, 128, 8
    $region41: #{tpu_custom_call.1} parent=1 // pred_fallthru
      _
    // Predicated region
    $region42: #{tpu_custom_call.1} parent=1 // pred_check
      _
    $region43: #{tpu_custom_call.1} parent=1 // pred_check_branch
      %740 = sbr.rel (0) target = $region45
    $region44: #{tpu_custom_call.1} parent=1 // pred_region
      %741 = dma.done [#allocation4], 1024
    $region45: #{tpu_custom_call.1} parent=1 // pred_fallthru
      _
    %742 = vsyncpa [#allocation3], 1
    %743 = vsyncpa [#allocation6], 1
    %744 = vsyncpa [#allocation4], 1

</llo_original>
